<compile_context>
chip_gen: v7x
topology: tpu7x:2x2x1
jax: 0.10.0
libtpu: 0.0.40
codegen_flags: <defaults>
</compile_context>

<pallas_src>
import jax
import jax.numpy as jnp
from jax.experimental import pallas as pl
from jax.experimental.pallas import tpu as pltpu

D_MODEL = 32
NHEAD = 4
DIM_FF = 64
HEAD_DIM = D_MODEL // NHEAD
LN_EPS = 1e-5

# bf16 operands are the main MXU/DMA lever on v6e/v7x once E/FF grow; kept f32 here so
# the test tolerance is dominated only by the approx reciprocal.
MXU_DTYPE = jnp.float32

# ---- packed parameter-slab layout (row offsets; every block starts on a multiple of 8) ----
SLAB_W = max(2 * D_MODEL, DIM_FF)        # lane width of the slab
R_WQK = 0                                # (E, 2E)  head-interleaved [q_h | k_h] columns
R_W1 = R_WQK + D_MODEL                   # (E, FF)
R_W2 = R_W1 + D_MODEL                    # (FF, E)
R_WV = R_W2 + DIM_FF                     # (E, E)
R_WO = R_WV + D_MODEL                    # (E, E)
R_VEC = R_WO + D_MODEL                   # 9 rows of 1-D vectors
(V_BQK, V_B1, V_BV, V_BO, V_B2, V_G1, V_BE1, V_G2, V_BE2) = range(9)
R_TOTAL = R_VEC + 9


def _layernorm(t, g, b):
    mu = jnp.mean(t, axis=-1, keepdims=True)
    var = jnp.mean((t - mu) ** 2, axis=-1, keepdims=True)
    return (t - mu) * jax.lax.rsqrt(var + LN_EPS) * g + b


def _mm(a, b):
    return jnp.dot(a.astype(MXU_DTYPE), b.astype(MXU_DTYPE),
                   preferred_element_type=jnp.float32)


def _encoder_kernel(x_ref, pos_ref, slab_ref, out_ref):
    """One grid step == one sequence; x_ref/pos_ref/out_ref are (1, L, E) tiles."""
    E, FF, H, Dh = D_MODEL, DIM_FF, NHEAD, HEAD_DIM
    x = x_ref[0]                                # (L, E)
    qk_in = x + pos_ref[0]                      # q = k = src + pos (v comes from src)

    # weights: static, sublane-aligned slices of the single packed slab
    wqk_t = slab_ref[R_WQK:R_WQK + E, :2 * E]
    w1_t = slab_ref[R_W1:R_W1 + E, :FF]
    w2_t = slab_ref[R_W2:R_W2 + FF, :E]
    wv_t = slab_ref[R_WV:R_WV + E, :E]
    wo_t = slab_ref[R_WO:R_WO + E, :E]

    def vec(row, width):
        r = R_VEC + row
        return slab_ref[r:r + 1, :width]        # (1, width), broadcasts over rows

    # fused Q|K projection (head-interleaved columns, 1/sqrt(Dh) pre-folded) + V projection
    qk = _mm(qk_in, wqk_t) + vec(V_BQK, 2 * E)                    # (L, 2E)
    v = _mm(x, wv_t) + vec(V_BV, E)                               # (L, E)

    # head-major views (H, L, .): one stack per tensor (proven-lowerable relayout)
    qk_h = jnp.stack([qk[:, 2 * Dh * h:2 * Dh * (h + 1)] for h in range(H)], axis=0)
    q_h = qk_h[:, :, :Dh]            # already scaled by 1/sqrt(Dh) via the weights
    k_h = qk_h[:, :, Dh:]
    v_h = jnp.stack([v[:, Dh * h:Dh * (h + 1)] for h in range(H)], axis=0)

    # per-sequence attention, batched over the leading head axis (no mask needed)
    s = jnp.einsum('hld,hmd->hlm', q_h, k_h, preferred_element_type=jnp.float32)
    s = s - jnp.max(s, axis=-1, keepdims=True)
    p = jnp.exp(s)
    p = p * pl.reciprocal(jnp.sum(p, axis=-1, keepdims=True), approx=True)
    ctx = jnp.einsum('hlm,hmd->hld', p, v_h, preferred_element_type=jnp.float32)

    # single output projection over the lane-concatenated heads
    ctx2d = jnp.concatenate([ctx[h] for h in range(H)], axis=1)   # (L, E)
    attn = _mm(ctx2d, wo_t) + vec(V_BO, E)

    # residual + LayerNorm1
    y = _layernorm(x + attn, vec(V_G1, E), vec(V_BE1, E))

    # feed-forward (ReLU); dropout = identity at inference
    h1 = jnp.maximum(_mm(y, w1_t) + vec(V_B1, FF), 0.0)
    h2 = _mm(h1, w2_t) + vec(V_B2, E)

    # residual + LayerNorm2
    out_ref[0] = _layernorm(y + h2, vec(V_G2, E), vec(V_BE2, E))


def _pack_params(params):
    """Pre-transpose / interleave weights and pack everything into one (R_TOTAL, SLAB_W) slab."""
    (wq, wk, wv, bq, bk, bv, wo, bo, w1, b1, w2, b2, g1, be1, g2, be2) = params
    Dh, H = HEAD_DIM, NHEAD
    scale = 1.0 / (Dh ** 0.5)

    # fold the attention scale into the Q projection; interleave [q_h | k_h] column
    # blocks so the kernel extracts one 2*Dh-wide lane block per head.
    wq_s, bq_s = wq.T * scale, bq * scale
    wk_t = wk.T
    wqk_cols, bqk_parts = [], []
    for h in range(H):
        sl = slice(h * Dh, (h + 1) * Dh)
        wqk_cols += [wq_s[:, sl], wk_t[:, sl]]
        bqk_parts += [bq_s[sl], bk[sl]]
    wqk_t = jnp.concatenate(wqk_cols, axis=1)            # (E, 2E)
    bqk = jnp.concatenate(bqk_parts)                     # (2E,)

    def mat(m):
        return jnp.pad(m, ((0, 0), (0, SLAB_W - m.shape[1])))

    def row(v_):
        return jnp.pad(v_, (0, SLAB_W - v_.shape[0]))[None, :]

    slab = jnp.concatenate([
        mat(wqk_t), mat(w1.T), mat(w2.T), mat(wv.T), mat(wo.T),
        row(bqk), row(b1), row(bv), row(bo), row(b2),
        row(g1), row(be1), row(g2), row(be2),
    ], axis=0).astype(jnp.float32)
    assert slab.shape == (R_TOTAL, SLAB_W)
    return slab


@jax.jit
def transformer_encoder_layer(src_lne, pos_lne, params):
    """src_lne / pos_lne: (L, N, E) like the PyTorch module.  Returns (L, N, E)."""
    L, N, E = src_lne.shape
    assert E == D_MODEL
    FF, H, Dh = DIM_FF, NHEAD, HEAD_DIM

    # (L, N, E) -> (N, L, E): per-sequence-contiguous tiles for the batch grid
    # (wrapper-side layout plumbing only).
    x_nle = jnp.transpose(src_lne, (1, 0, 2)).astype(jnp.float32)
    p_nle = jnp.transpose(pos_lne, (1, 0, 2)).astype(jnp.float32)
    slab = _pack_params(params)

    flops_seq = (2 * L * E * (2 * E) + 2 * L * E * E          # Q|K and V projections
                 + 2 * 2 * H * L * L * Dh                     # scores + context
                 + 2 * L * E * E                              # output projection
                 + 2 * L * E * FF + 2 * L * FF * E)           # FFN
    cost = pl.CostEstimate(
        flops=N * flops_seq,
        transcendentals=N * (H * L * L + H * L + 2 * L),      # exp + recip + rsqrt
        bytes_accessed=4 * (3 * N * L * E + slab.size))

    out_nle = pl.pallas_call(
        _encoder_kernel,
        out_shape=jax.ShapeDtypeStruct((N, L, E), jnp.float32),
        grid=(N,),
        in_specs=[
            pl.BlockSpec((1, L, E), lambda n: (n, 0, 0)),
            pl.BlockSpec((1, L, E), lambda n: (n, 0, 0)),
            # whole slab, constant index map -> resident across steps, single DMA
            pl.BlockSpec((R_TOTAL, SLAB_W), lambda n: (0, 0)),
        ],
        out_specs=pl.BlockSpec((1, L, E), lambda n: (n, 0, 0)),
        compiler_params=pltpu.CompilerParams(
            dimension_semantics=("parallel",)),   # sequences shard over v7x's two TCs
        cost_estimate=cost,
    )(x_nle, p_nle, slab)

    # TODO(synk): for large L*E present a 128-multiple last dim to the BlockSpecs
    # (lane-dense loads/stores); at (L, E) = (8, 32) the masked stores are negligible.
    return jnp.transpose(out_nle, (1, 0, 2))


def ref_forward(src_lne, pos_lne, params):
    """Pure-JAX reference of forward_post for validation."""
    (wq, wk, wv, bq, bk, bv, wo, bo, w1, b1, w2, b2, g1, be1, g2, be2) = params
    x = jnp.transpose(src_lne, (1, 0, 2))    # (N, L, E)
    pos = jnp.transpose(pos_lne, (1, 0, 2))
    N, L, E = x.shape
    qk = x + pos
    q = qk @ wq.T + bq
    k = qk @ wk.T + bk
    v = x @ wv.T + bv
    Dh = E // NHEAD
    q = q.reshape(N, L, NHEAD, Dh).transpose(0, 2, 1, 3)
    k = k.reshape(N, L, NHEAD, Dh).transpose(0, 2, 1, 3)
    v = v.reshape(N, L, NHEAD, Dh).transpose(0, 2, 1, 3)
    s = jnp.einsum('nhld,nhmd->nhlm', q, k) / jnp.sqrt(jnp.float32(Dh))
    p = jax.nn.softmax(s, axis=-1)
    o = jnp.einsum('nhlm,nhmd->nhld', p, v).transpose(0, 2, 1, 3).reshape(N, L, E)
    attn = o @ wo.T + bo
    y = _layernorm(x + attn, g1, be1)
    h = jax.nn.relu(y @ w1.T + b1)
    z = _layernorm(y + (h @ w2.T + b2), g2, be2)
    return jnp.transpose(z, (1, 0, 2))


if __name__ == "__main__":
    key = jax.random.PRNGKey(0)
    keys = jax.random.split(key, 16)

    L, N, E, FF = 8, 2, D_MODEL, DIM_FF

    # deterministic synthetic parameters (shapes per nn.MultiheadAttention / nn.Linear / nn.LayerNorm)
    wq = 0.05 * jax.random.normal(keys[0], (E, E), jnp.float32)
    wk = 0.05 * jax.random.normal(keys[1], (E, E), jnp.float32)
    wv = 0.05 * jax.random.normal(keys[2], (E, E), jnp.float32)
    bq = 0.05 * jax.random.normal(keys[3], (E,), jnp.float32)
    bk = 0.05 * jax.random.normal(keys[4], (E,), jnp.float32)
    bv = 0.05 * jax.random.normal(keys[5], (E,), jnp.float32)
    wo = 0.05 * jax.random.normal(keys[6], (E, E), jnp.float32)
    bo = 0.05 * jax.random.normal(keys[7], (E,), jnp.float32)
    w1 = 0.05 * jax.random.normal(keys[8], (FF, E), jnp.float32)
    b1 = 0.05 * jax.random.normal(keys[9], (FF,), jnp.float32)
    w2 = 0.05 * jax.random.normal(keys[10], (E, FF), jnp.float32)
    b2 = 0.05 * jax.random.normal(keys[11], (E,), jnp.float32)
    g1 = jnp.ones((E,), jnp.float32)
    be1 = jnp.zeros((E,), jnp.float32)
    g2 = jnp.ones((E,), jnp.float32)
    be2 = jnp.zeros((E,), jnp.float32)
    params = (wq, wk, wv, bq, bk, bv, wo, bo, w1, b1, w2, b2, g1, be1, g2, be2)

    src = jax.random.normal(keys[12], (L, N, E), jnp.float32)
    pos = jax.random.normal(keys[13], (L, N, E), jnp.float32)

    out = transformer_encoder_layer(src, pos, params)
    out = jax.block_until_ready(out)

    ref = ref_forward(src, pos, params)
    assert out.shape == (L, N, E)
    # tolerance loosened vs f32 reference because of the approx (EUP) softmax reciprocal
    assert jnp.allclose(out, ref, atol=5e-3, rtol=5e-3), "mismatch vs JAX reference"

    print("KERNEL_OK")
</pallas_src>

<mosaic_0001>
module attributes {stable_mosaic.version = 11 : i64} {
  func.func @_encoder_kernel(%arg0: i32, %arg1: memref<1x8x32xf32, #tpu.memory_space<vmem>>, %arg2: memref<1x8x32xf32, #tpu.memory_space<vmem>>, %arg3: memref<201x64xf32, #tpu.memory_space<vmem>>, %arg4: memref<1x8x32xf32, #tpu.memory_space<vmem>>) attributes {dimension_semantics = [#tpu.dimension_semantics<parallel>], iteration_bounds = array<i64: 2>, scalar_prefetch = 0 : i64, scratch_operands = 0 : i64, tpu.core_type = #tpu.core_type<tc>, window_params = [{transform_indices = @transform_0, window_bounds = array<i64: 1, 8, 32>}, {transform_indices = @transform_1, window_bounds = array<i64: 1, 8, 32>}, {pipeline_mode = #tpu.pipeline_mode<synchronous>, transform_indices = @transform_2, window_bounds = array<i64: 201, 64>}, {transform_indices = @transform_3, window_bounds = array<i64: 1, 8, 32>}]} {
    %c0 = arith.constant 0 : index
    %c0_0 = arith.constant 0 : index
    %c0_1 = arith.constant 0 : index
    %0 = vector.load %arg1[%c0, %c0_0, %c0_1] : memref<1x8x32xf32, #tpu.memory_space<vmem>>, vector<1x8x32xf32>
    %1 = vector.shape_cast %0 : vector<1x8x32xf32> to vector<8x32xf32>
    %c0_2 = arith.constant 0 : index
    %c0_3 = arith.constant 0 : index
    %c0_4 = arith.constant 0 : index
    %2 = vector.load %arg2[%c0_2, %c0_3, %c0_4] : memref<1x8x32xf32, #tpu.memory_space<vmem>>, vector<1x8x32xf32>
    %3 = vector.shape_cast %2 : vector<1x8x32xf32> to vector<8x32xf32>
    %4 = arith.addf %1, %3 : vector<8x32xf32>
    %c0_5 = arith.constant 0 : index
    %c0_6 = arith.constant 0 : index
    %5 = vector.load %arg3[%c0_5, %c0_6] : memref<201x64xf32, #tpu.memory_space<vmem>>, vector<32x64xf32>
    %c32 = arith.constant 32 : index
    %c0_7 = arith.constant 0 : index
    %6 = vector.load %arg3[%c32, %c0_7] : memref<201x64xf32, #tpu.memory_space<vmem>>, vector<32x64xf32>
    %c64 = arith.constant 64 : index
    %c0_8 = arith.constant 0 : index
    %7 = vector.load %arg3[%c64, %c0_8] : memref<201x64xf32, #tpu.memory_space<vmem>>, vector<64x32xf32>
    %c128 = arith.constant 128 : index
    %c0_9 = arith.constant 0 : index
    %8 = vector.load %arg3[%c128, %c0_9] : memref<201x64xf32, #tpu.memory_space<vmem>>, vector<32x32xf32>
    %c160 = arith.constant 160 : index
    %c0_10 = arith.constant 0 : index
    %9 = vector.load %arg3[%c160, %c0_10] : memref<201x64xf32, #tpu.memory_space<vmem>>, vector<32x32xf32>
    %cst = arith.constant dense<0.000000e+00> : vector<8x64xf32>
    %10 = tpu.matmul %4, %5, %cst {dimension_numbers = #tpu.dot_dimension_numbers<[1], [0], [0], [1], [0, 0, 1, 1], [], []>} : vector<8x32xf32>, vector<32x64xf32>, vector<8x64xf32> -> vector<8x64xf32>
    %c192 = arith.constant 192 : index
    %c0_11 = arith.constant 0 : index
    %11 = vector.load %arg3[%c192, %c0_11] : memref<201x64xf32, #tpu.memory_space<vmem>>, vector<1x64xf32>
    %12 = vector.broadcast %11 : vector<1x64xf32> to vector<8x64xf32>
    %13 = arith.addf %10, %12 : vector<8x64xf32>
    %cst_12 = arith.constant dense<0.000000e+00> : vector<8x32xf32>
    %14 = tpu.matmul %1, %8, %cst_12 {dimension_numbers = #tpu.dot_dimension_numbers<[1], [0], [0], [1], [0, 0, 1, 1], [], []>} : vector<8x32xf32>, vector<32x32xf32>, vector<8x32xf32> -> vector<8x32xf32>
    %c194 = arith.constant 194 : index
    %c0_13 = arith.constant 0 : index
    %15 = vector.load %arg3[%c194, %c0_13] : memref<201x64xf32, #tpu.memory_space<vmem>>, vector<1x32xf32>
    %16 = vector.broadcast %15 : vector<1x32xf32> to vector<8x32xf32>
    %17 = arith.addf %14, %16 : vector<8x32xf32>
    %18 = vector.extract_strided_slice %13 {offsets = [0, 0], sizes = [8, 16], strides = [1, 1]} : vector<8x64xf32> to vector<8x16xf32>
    %19 = vector.extract_strided_slice %13 {offsets = [0, 16], sizes = [8, 16], strides = [1, 1]} : vector<8x64xf32> to vector<8x16xf32>
    %20 = vector.extract_strided_slice %13 {offsets = [0, 32], sizes = [8, 16], strides = [1, 1]} : vector<8x64xf32> to vector<8x16xf32>
    %21 = vector.extract_strided_slice %13 {offsets = [0, 48], sizes = [8, 16], strides = [1, 1]} : vector<8x64xf32> to vector<8x16xf32>
    %22 = vector.shape_cast %18 : vector<8x16xf32> to vector<1x8x16xf32>
    %23 = vector.shape_cast %19 : vector<8x16xf32> to vector<1x8x16xf32>
    %24 = vector.shape_cast %20 : vector<8x16xf32> to vector<1x8x16xf32>
    %25 = vector.shape_cast %21 : vector<8x16xf32> to vector<1x8x16xf32>
    %26 = tpu.concatenate %22, %23, %24, %25 in 0 : vector<1x8x16xf32>, vector<1x8x16xf32>, vector<1x8x16xf32>, vector<1x8x16xf32> -> vector<4x8x16xf32>
    %27 = vector.extract_strided_slice %26 {offsets = [0, 0, 0], sizes = [4, 8, 8], strides = [1, 1, 1]} : vector<4x8x16xf32> to vector<4x8x8xf32>
    %28 = vector.extract_strided_slice %26 {offsets = [0, 0, 8], sizes = [4, 8, 8], strides = [1, 1, 1]} : vector<4x8x16xf32> to vector<4x8x8xf32>
    %29 = vector.extract_strided_slice %17 {offsets = [0, 0], sizes = [8, 8], strides = [1, 1]} : vector<8x32xf32> to vector<8x8xf32>
    %30 = vector.extract_strided_slice %17 {offsets = [0, 8], sizes = [8, 8], strides = [1, 1]} : vector<8x32xf32> to vector<8x8xf32>
    %31 = vector.extract_strided_slice %17 {offsets = [0, 16], sizes = [8, 8], strides = [1, 1]} : vector<8x32xf32> to vector<8x8xf32>
    %32 = vector.extract_strided_slice %17 {offsets = [0, 24], sizes = [8, 8], strides = [1, 1]} : vector<8x32xf32> to vector<8x8xf32>
    %33 = vector.shape_cast %29 : vector<8x8xf32> to vector<1x8x8xf32>
    %34 = vector.shape_cast %30 : vector<8x8xf32> to vector<1x8x8xf32>
    %35 = vector.shape_cast %31 : vector<8x8xf32> to vector<1x8x8xf32>
    %36 = vector.shape_cast %32 : vector<8x8xf32> to vector<1x8x8xf32>
    %37 = tpu.concatenate %33, %34, %35, %36 in 0 : vector<1x8x8xf32>, vector<1x8x8xf32>, vector<1x8x8xf32>, vector<1x8x8xf32> -> vector<4x8x8xf32>
    "tpu.trace_start"() <{level = 10 : i32, message = "hld,hmd->hlm"}> : () -> ()
    %cst_14 = arith.constant dense<0.000000e+00> : vector<4x8x8xf32>
    %38 = tpu.matmul %27, %28, %cst_14 {dimension_numbers = #tpu.dot_dimension_numbers<[2], [2], [1], [1], [0, 0, 0, 1, 1, 1], [0], [0]>} : vector<4x8x8xf32>, vector<4x8x8xf32>, vector<4x8x8xf32> -> vector<4x8x8xf32>
    "tpu.trace_stop"() : () -> ()
    %cst_15 = arith.constant dense<0xFF800000> : vector<4x8xf32>
    %39 = vector.multi_reduction <maximumf>, %38, %cst_15 [2] : vector<4x8x8xf32> to vector<4x8xf32>
    %40 = vector.shape_cast %39 : vector<4x8xf32> to vector<4x8x1xf32>
    %41 = vector.broadcast %40 : vector<4x8x1xf32> to vector<4x8x8xf32>
    %42 = arith.subf %38, %41 : vector<4x8x8xf32>
    %43 = math.exp %42 : vector<4x8x8xf32>
    %cst_16 = arith.constant dense<0.000000e+00> : vector<4x8xf32>
    %44 = vector.multi_reduction <add>, %43, %cst_16 [2] : vector<4x8x8xf32> to vector<4x8xf32>
    %45 = vector.shape_cast %44 : vector<4x8xf32> to vector<4x8x1xf32>
    %46 = tpu.reciprocal %45 {approx = true} : vector<4x8x1xf32> -> vector<4x8x1xf32>
    %47 = vector.broadcast %46 : vector<4x8x1xf32> to vector<4x8x8xf32>
    %48 = arith.mulf %43, %47 : vector<4x8x8xf32>
    "tpu.trace_start"() <{level = 10 : i32, message = "hlm,hmd->hld"}> : () -> ()
    %cst_17 = arith.constant dense<0.000000e+00> : vector<4x8x8xf32>
    %49 = tpu.matmul %48, %37, %cst_17 {dimension_numbers = #tpu.dot_dimension_numbers<[2], [1], [1], [2], [0, 0, 0, 1, 1, 2], [0], [0]>} : vector<4x8x8xf32>, vector<4x8x8xf32>, vector<4x8x8xf32> -> vector<4x8x8xf32>
    "tpu.trace_stop"() : () -> ()
    %50 = vector.extract_strided_slice %49 {offsets = [0, 0, 0], sizes = [1, 8, 8], strides = [1, 1, 1]} : vector<4x8x8xf32> to vector<1x8x8xf32>
    %51 = vector.shape_cast %50 : vector<1x8x8xf32> to vector<8x8xf32>
    %52 = vector.extract_strided_slice %49 {offsets = [1, 0, 0], sizes = [1, 8, 8], strides = [1, 1, 1]} : vector<4x8x8xf32> to vector<1x8x8xf32>
    %53 = vector.shape_cast %52 : vector<1x8x8xf32> to vector<8x8xf32>
    %54 = vector.extract_strided_slice %49 {offsets = [2, 0, 0], sizes = [1, 8, 8], strides = [1, 1, 1]} : vector<4x8x8xf32> to vector<1x8x8xf32>
    %55 = vector.shape_cast %54 : vector<1x8x8xf32> to vector<8x8xf32>
    %56 = vector.extract_strided_slice %49 {offsets = [3, 0, 0], sizes = [1, 8, 8], strides = [1, 1, 1]} : vector<4x8x8xf32> to vector<1x8x8xf32>
    %57 = vector.shape_cast %56 : vector<1x8x8xf32> to vector<8x8xf32>
    %58 = tpu.concatenate %51, %53, %55, %57 in 1 : vector<8x8xf32>, vector<8x8xf32>, vector<8x8xf32>, vector<8x8xf32> -> vector<8x32xf32>
    %cst_18 = arith.constant dense<0.000000e+00> : vector<8x32xf32>
    %59 = tpu.matmul %58, %9, %cst_18 {dimension_numbers = #tpu.dot_dimension_numbers<[1], [0], [0], [1], [0, 0, 1, 1], [], []>} : vector<8x32xf32>, vector<32x32xf32>, vector<8x32xf32> -> vector<8x32xf32>
    %c195 = arith.constant 195 : index
    %c0_19 = arith.constant 0 : index
    %60 = vector.load %arg3[%c195, %c0_19] : memref<201x64xf32, #tpu.memory_space<vmem>>, vector<1x32xf32>
    %61 = vector.broadcast %60 : vector<1x32xf32> to vector<8x32xf32>
    %62 = arith.addf %59, %61 : vector<8x32xf32>
    %63 = arith.addf %1, %62 : vector<8x32xf32>
    %c197 = arith.constant 197 : index
    %c0_20 = arith.constant 0 : index
    %64 = vector.load %arg3[%c197, %c0_20] : memref<201x64xf32, #tpu.memory_space<vmem>>, vector<1x32xf32>
    %c198 = arith.constant 198 : index
    %c0_21 = arith.constant 0 : index
    %65 = vector.load %arg3[%c198, %c0_21] : memref<201x64xf32, #tpu.memory_space<vmem>>, vector<1x32xf32>
    %cst_22 = arith.constant dense<0.000000e+00> : vector<8xf32>
    %66 = vector.multi_reduction <add>, %63, %cst_22 [1] : vector<8x32xf32> to vector<8xf32>
    %67 = vector.shape_cast %66 : vector<8xf32> to vector<8x1xf32>
    %cst_23 = arith.constant 3.200000e+01 : f32
    %68 = vector.broadcast %cst_23 : f32 to vector<8x1xf32>
    %69 = arith.divf %67, %68 : vector<8x1xf32>
    %70 = vector.broadcast %69 : vector<8x1xf32> to vector<8x32xf32>
    %71 = arith.subf %63, %70 : vector<8x32xf32>
    %72 = arith.mulf %71, %71 : vector<8x32xf32>
    %cst_24 = arith.constant dense<0.000000e+00> : vector<8xf32>
    %73 = vector.multi_reduction <add>, %72, %cst_24 [1] : vector<8x32xf32> to vector<8xf32>
    %74 = vector.shape_cast %73 : vector<8xf32> to vector<8x1xf32>
    %cst_25 = arith.constant 3.200000e+01 : f32
    %75 = vector.broadcast %cst_25 : f32 to vector<8x1xf32>
    %76 = arith.divf %74, %75 : vector<8x1xf32>
    %77 = vector.broadcast %69 : vector<8x1xf32> to vector<8x32xf32>
    %78 = arith.subf %63, %77 : vector<8x32xf32>
    %cst_26 = arith.constant 9.99999974E-6 : f32
    %79 = vector.broadcast %cst_26 : f32 to vector<8x1xf32>
    %80 = arith.addf %76, %79 : vector<8x1xf32>
    %81 = math.rsqrt %80 : vector<8x1xf32>
    %82 = vector.broadcast %81 : vector<8x1xf32> to vector<8x32xf32>
    %83 = arith.mulf %78, %82 : vector<8x32xf32>
    %84 = vector.broadcast %64 : vector<1x32xf32> to vector<8x32xf32>
    %85 = arith.mulf %83, %84 : vector<8x32xf32>
    %86 = vector.broadcast %65 : vector<1x32xf32> to vector<8x32xf32>
    %87 = arith.addf %85, %86 : vector<8x32xf32>
    %cst_27 = arith.constant dense<0.000000e+00> : vector<8x64xf32>
    %88 = tpu.matmul %87, %6, %cst_27 {dimension_numbers = #tpu.dot_dimension_numbers<[1], [0], [0], [1], [0, 0, 1, 1], [], []>} : vector<8x32xf32>, vector<32x64xf32>, vector<8x64xf32> -> vector<8x64xf32>
    %c193 = arith.constant 193 : index
    %c0_28 = arith.constant 0 : index
    %89 = vector.load %arg3[%c193, %c0_28] : memref<201x64xf32, #tpu.memory_space<vmem>>, vector<1x64xf32>
    %90 = vector.broadcast %89 : vector<1x64xf32> to vector<8x64xf32>
    %91 = arith.addf %88, %90 : vector<8x64xf32>
    %cst_29 = arith.constant 0.000000e+00 : f32
    %92 = vector.broadcast %cst_29 : f32 to vector<8x64xf32>
    %93 = arith.maximumf %91, %92 : vector<8x64xf32>
    %cst_30 = arith.constant dense<0.000000e+00> : vector<8x32xf32>
    %94 = tpu.matmul %93, %7, %cst_30 {dimension_numbers = #tpu.dot_dimension_numbers<[1], [0], [0], [1], [0, 0, 1, 1], [], []>} : vector<8x64xf32>, vector<64x32xf32>, vector<8x32xf32> -> vector<8x32xf32>
    %c196 = arith.constant 196 : index
    %c0_31 = arith.constant 0 : index
    %95 = vector.load %arg3[%c196, %c0_31] : memref<201x64xf32, #tpu.memory_space<vmem>>, vector<1x32xf32>
    %96 = vector.broadcast %95 : vector<1x32xf32> to vector<8x32xf32>
    %97 = arith.addf %94, %96 : vector<8x32xf32>
    %98 = arith.addf %87, %97 : vector<8x32xf32>
    %c199 = arith.constant 199 : index
    %c0_32 = arith.constant 0 : index
    %99 = vector.load %arg3[%c199, %c0_32] : memref<201x64xf32, #tpu.memory_space<vmem>>, vector<1x32xf32>
    %c200 = arith.constant 200 : index
    %c0_33 = arith.constant 0 : index
    %100 = vector.load %arg3[%c200, %c0_33] : memref<201x64xf32, #tpu.memory_space<vmem>>, vector<1x32xf32>
    %cst_34 = arith.constant dense<0.000000e+00> : vector<8xf32>
    %101 = vector.multi_reduction <add>, %98, %cst_34 [1] : vector<8x32xf32> to vector<8xf32>
    %102 = vector.shape_cast %101 : vector<8xf32> to vector<8x1xf32>
    %cst_35 = arith.constant 3.200000e+01 : f32
    %103 = vector.broadcast %cst_35 : f32 to vector<8x1xf32>
    %104 = arith.divf %102, %103 : vector<8x1xf32>
    %105 = vector.broadcast %104 : vector<8x1xf32> to vector<8x32xf32>
    %106 = arith.subf %98, %105 : vector<8x32xf32>
    %107 = arith.mulf %106, %106 : vector<8x32xf32>
    %cst_36 = arith.constant dense<0.000000e+00> : vector<8xf32>
    %108 = vector.multi_reduction <add>, %107, %cst_36 [1] : vector<8x32xf32> to vector<8xf32>
    %109 = vector.shape_cast %108 : vector<8xf32> to vector<8x1xf32>
    %cst_37 = arith.constant 3.200000e+01 : f32
    %110 = vector.broadcast %cst_37 : f32 to vector<8x1xf32>
    %111 = arith.divf %109, %110 : vector<8x1xf32>
    %112 = vector.broadcast %104 : vector<8x1xf32> to vector<8x32xf32>
    %113 = arith.subf %98, %112 : vector<8x32xf32>
    %cst_38 = arith.constant 9.99999974E-6 : f32
    %114 = vector.broadcast %cst_38 : f32 to vector<8x1xf32>
    %115 = arith.addf %111, %114 : vector<8x1xf32>
    %116 = math.rsqrt %115 : vector<8x1xf32>
    %117 = vector.broadcast %116 : vector<8x1xf32> to vector<8x32xf32>
    %118 = arith.mulf %113, %117 : vector<8x32xf32>
    %119 = vector.broadcast %99 : vector<1x32xf32> to vector<8x32xf32>
    %120 = arith.mulf %118, %119 : vector<8x32xf32>
    %121 = vector.broadcast %100 : vector<1x32xf32> to vector<8x32xf32>
    %122 = arith.addf %120, %121 : vector<8x32xf32>
    %c0_39 = arith.constant 0 : index
    %c0_40 = arith.constant 0 : index
    %c0_41 = arith.constant 0 : index
    %123 = vector.load %arg4[%c0_39, %c0_40, %c0_41] : memref<1x8x32xf32, #tpu.memory_space<vmem>>, vector<1x8x32xf32>
    %124 = vector.shape_cast %123 : vector<1x8x32xf32> to vector<8x32xf32>
    %125 = vector.shape_cast %122 : vector<8x32xf32> to vector<1x8x32xf32>
    tpu.vector_store %arg4[%c0_39, %c0_40, %c0_41], %125 {strides = array<i32>} : memref<1x8x32xf32, #tpu.memory_space<vmem>>, vector<1x8x32xf32>,
    return
  }
  func.func @transform_0(%arg0: i32) -> (i32, i32, i32) {
    %c0_i32 = arith.constant 0 : i32
    %c0_i32_0 = arith.constant 0 : i32
    %c0_i32_1 = arith.constant 0 : i32
    return %arg0, %c0_i32, %c0_i32_0 : i32, i32, i32
  }
  func.func @transform_1(%arg0: i32) -> (i32, i32, i32) {
    %c0_i32 = arith.constant 0 : i32
    %c0_i32_0 = arith.constant 0 : i32
    %c0_i32_1 = arith.constant 0 : i32
    return %arg0, %c0_i32, %c0_i32_0 : i32, i32, i32
  }
  func.func @transform_2(%arg0: i32) -> (i32, i32) {
    %c0_i32 = arith.constant 0 : i32
    %c0_i32_0 = arith.constant 0 : i32
    %c0_i32_1 = arith.constant 0 : i32
    return %c0_i32, %c0_i32_0 : i32, i32
  }
  func.func @transform_3(%arg0: i32) -> (i32, i32, i32) {
    %c0_i32 = arith.constant 0 : i32
    %c0_i32_0 = arith.constant 0 : i32
    %c0_i32_1 = arith.constant 0 : i32
    return %arg0, %c0_i32, %c0_i32_0 : i32, i32, i32
  }
}

</mosaic_0001>

<llo_original>
// kernel: transformer_encoder_layer.1
$region0: #{transformer_encoder_layer.1}
  #allocation0 [shape = 'u32[]', space=smem, size = 0x4, offset = 0x4, fixed_abs, tag = 'smem constant byte address 0x4 - core index']
  #allocation1 [shape = 'u32[144,128]{1,0:T(1,128)}', space=vmem, size = 0x12000, scoped, tag = 'internal scratch']
  %s0 = inlined_call_operand.vmem [shape: f32[2,8,32], index: 0, kind: input, shape index: {}]
  %s1 = inlined_call_operand.vmem [shape: f32[2,8,32], index: 1, kind: input, shape index: {}]
  %s2 = inlined_call_operand.vmem [shape: f32[201,64], index: 2, kind: input, shape index: {}]
  %s3 = inlined_call_operand.vmem [shape: f32[2,8,32], index: 3, kind: output, shape index: {}]
  %s4 = sld [smem:[#allocation0]]
  $region45: #{transformer_encoder_layer.1} parent=0
    _
  %s6 = ssub.s32 1, %s4
  %s7 = scalar_select 0, %s6, %s4
  loop: start=0, step=1, limit=4
  $region2: #{transformer_encoder_layer.1} parent=0 // loop_pre_header
    _
  $region3: #{transformer_encoder_layer.1} parent=0 // loop_header
    %s9 = sphi 0, %s13
    %p10 = scmp.ge.s32.totalorder %s9, 4
    %s19 = sphi 0, %s21
    %s22 = sphi 0, %s19
    %s23 = sphi 0, %s22
    %s39 = sphi 0, %s23
    %s45 = sphi 0, %s47
    %s48 = sphi 0, %s45
    %s49 = sphi 0, %s48
    %s65 = sphi 0, %s49
    %s69 = sphi 0, %s69
    %s71 = sphi 0, %s69
    %s72 = sphi 0, %s71
    %s86 = sphi 0, %s72
    %s92 = sphi 0, %s94
    %s95 = sphi 0, %s92
    %s96 = sphi 0, %s95
    %s112 = sphi 0, %s96
  $region4: #{transformer_encoder_layer.1} parent=0 // loop_header_branch
    %12 = sbr.rel (%p10) target = $region8
  $region5: #{transformer_encoder_layer.1} parent=0 // loop_body
    %s14 = ssub.s32 %s9, 1
    %s15 = ssub.s32 %s9, 2
    %s16 = sadd.s32 %s9, 1
    %s17 = ssub.s32 %s9, %s16
    %p18 = scmp.eq.s32.totalorder %s17, 0
    %s20 = sadd.s32 %s19, 1
    %s21 = scalar_select %p18, %s19, %s20
    %p24 = pneg %p18
    %p25 = scmp.eq.s32.totalorder %s9, 1
    %p26 = por %p24, %p25
    %p27 = scmp.ne.s32.totalorder %s19, %s22
    %p28 = scmp.eq.s32.totalorder %s9, 0
    %p29 = por %p27, %p28
    %p30 = scmp.ne.s32.totalorder %s19, %s22
    %p31 = scmp.eq.s32.totalorder %s14, 1
    %p32 = por %p30, %p31
    %p33 = scmp.ne.s32.totalorder %s22, %s23
    %p34 = scmp.eq.s32.totalorder %s14, 0
    %p35 = por %p33, %p34
    %p36 = scmp.ne.s32.totalorder %s22, %s23
    %p37 = scmp.eq.s32.totalorder %s15, 1
    %p38 = por %p36, %p37
    %p40 = scmp.ne.s32.totalorder %s23, %s39
    %p41 = scmp.eq.s32.totalorder %s15, 0
    %p42 = por %p40, %p41
    %s43 = ssub.s32 %s9, %s16
    %p44 = scmp.eq.s32.totalorder %s43, 0
    %s46 = sadd.s32 %s45, 1
    %s47 = scalar_select %p44, %s45, %s46
    %p50 = pneg %p44
    %p51 = scmp.eq.s32.totalorder %s9, 1
    %p52 = por %p50, %p51
    %p53 = scmp.ne.s32.totalorder %s45, %s48
    %p54 = scmp.eq.s32.totalorder %s9, 0
    %p55 = por %p53, %p54
    %p56 = scmp.ne.s32.totalorder %s45, %s48
    %p57 = scmp.eq.s32.totalorder %s14, 1
    %p58 = por %p56, %p57
    %p59 = scmp.ne.s32.totalorder %s48, %s49
    %p60 = scmp.eq.s32.totalorder %s14, 0
    %p61 = por %p59, %p60
    %p62 = scmp.ne.s32.totalorder %s48, %s49
    %p63 = scmp.eq.s32.totalorder %s15, 1
    %p64 = por %p62, %p63
    %p66 = scmp.ne.s32.totalorder %s49, %s65
    %p67 = scmp.eq.s32.totalorder %s15, 0
    %p68 = por %p66, %p67
    %s70 = sadd.s32 %s69, 1
    %p73 = scmp.eq.s32.totalorder %s9, 1
    %p74 = scmp.ne.s32.totalorder %s69, %s71
    %p75 = scmp.eq.s32.totalorder %s9, 0
    %p76 = por %p74, %p75
    %p77 = scmp.ne.s32.totalorder %s69, %s71
    %p78 = scmp.eq.s32.totalorder %s14, 1
    %p79 = por %p77, %p78
    %p80 = scmp.ne.s32.totalorder %s71, %s72
    %p81 = scmp.eq.s32.totalorder %s14, 0
    %p82 = por %p80, %p81
    %p83 = scmp.ne.s32.totalorder %s71, %s72
    %p84 = scmp.eq.s32.totalorder %s15, 1
    %p85 = por %p83, %p84
    %p87 = scmp.ne.s32.totalorder %s72, %s86
    %p88 = scmp.eq.s32.totalorder %s15, 0
    %p89 = por %p87, %p88
    %s90 = ssub.s32 %s9, %s16
    %p91 = scmp.eq.s32.totalorder %s90, 0
    %s93 = sadd.s32 %s92, 1
    %s94 = scalar_select %p91, %s92, %s93
    %p97 = pneg %p91
    %p98 = scmp.eq.s32.totalorder %s9, 1
    %p99 = por %p97, %p98
    %p100 = scmp.ne.s32.totalorder %s92, %s95
    %p101 = scmp.eq.s32.totalorder %s9, 0
    %p102 = por %p100, %p101
    %p103 = scmp.ne.s32.totalorder %s92, %s95
    %p104 = scmp.eq.s32.totalorder %s14, 1
    %p105 = por %p103, %p104
    %p106 = scmp.ne.s32.totalorder %s95, %s96
    %p107 = scmp.eq.s32.totalorder %s14, 0
    %p108 = por %p106, %p107
    %p109 = scmp.ne.s32.totalorder %s95, %s96
    %p110 = scmp.eq.s32.totalorder %s15, 1
    %p111 = por %p109, %p110
    %p113 = scmp.ne.s32.totalorder %s96, %s112
    %p114 = scmp.eq.s32.totalorder %s15, 0
    %p115 = por %p113, %p114
    %p116 = scmp.le.s32.totalorder 1, %s9
    %p117 = scmp.lt.s32.totalorder %s9, 3
    %p118 = pnand %p116, %p117
    %p119 = pneg %p118
    // Predicated region
    $region9: #{transformer_encoder_layer.1} parent=5 // pred_check
      _
    $region10: #{transformer_encoder_layer.1} parent=5 // pred_check_branch
      %121 = sbr.rel (%p118) target = $region12
    $region11: #{transformer_encoder_layer.1} parent=5 // pred_region
      %s122 = ssub.s32 %s9, 1
      // Predicated region
      $region13: #{transformer_encoder_layer.1} parent=11 // pred_check
        %p123 = pneg %p82
      $region14: #{transformer_encoder_layer.1} parent=11 // pred_check_branch
        %125 = sbr.rel (%p123) target = $region16
      $region15: #{transformer_encoder_layer.1} parent=11 // pred_region
        _
      $region16: #{transformer_encoder_layer.1} parent=11 // pred_fallthru
        _
    $region12: #{transformer_encoder_layer.1} parent=5 // pred_fallthru
      _
    %p126 = scmp.lt.s32.totalorder %s9, 2
    // Predicated region
    $region17: #{transformer_encoder_layer.1} parent=5 // pred_check
      %p127 = pneg %p126
    $region18: #{transformer_encoder_layer.1} parent=5 // pred_check_branch
      %129 = sbr.rel (%p127) target = $region20
    $region19: #{transformer_encoder_layer.1} parent=5 // pred_region
      // Predicated region
      $region21: #{transformer_encoder_layer.1} parent=19 // pred_check
        %p130 = pneg %p29
      $region22: #{transformer_encoder_layer.1} parent=19 // pred_check_branch
        %132 = sbr.rel (%p130) target = $region24
      $region23: #{transformer_encoder_layer.1} parent=19 // pred_region
        %p133 = scmp.lt.s32.totalorder %s9, 1
        %s134 = scalar_select %p133, %s9, 1
        %s135 = smul.addr %s134, 8
        %s136 = scalar_lea.vmem %s0, %s135
      $region24: #{transformer_encoder_layer.1} parent=19 // pred_fallthru
        _
      // Predicated region
      $region25: #{transformer_encoder_layer.1} parent=19 // pred_check
        %p137 = pneg %p55
      $region26: #{transformer_encoder_layer.1} parent=19 // pred_check_branch
        %139 = sbr.rel (%p137) target = $region28
      $region27: #{transformer_encoder_layer.1} parent=19 // pred_region
        %p140 = scmp.lt.s32.totalorder %s9, 1
        %s141 = scalar_select %p140, %s9, 1
        %s142 = smul.addr %s141, 8
        %s143 = scalar_lea.vmem %s1, %s142
      $region28: #{transformer_encoder_layer.1} parent=19 // pred_fallthru
        _
    $region20: #{transformer_encoder_layer.1} parent=5 // pred_fallthru
      _
    %p144 = scmp.le.s32.totalorder 1, %s9
    %p145 = scmp.lt.s32.totalorder %s9, 3
    %p146 = pnand %p144, %p145
    %p147 = pneg %p146
    // Predicated region
    $region29: #{transformer_encoder_layer.1} parent=5 // pred_check
      _
    $region30: #{transformer_encoder_layer.1} parent=5 // pred_check_branch
      %149 = sbr.rel (%p146) target = $region32
    $region31: #{transformer_encoder_layer.1} parent=5 // pred_region
      %s150 = ssub.s32 %s9, 1
      %p151 = scmp.lt.s32.totalorder %s14, 1
      %s152 = scalar_select %p151, %s14, 1
      %s153 = smul.addr %s152, 8
      %s154 = scalar_lea.vmem %s0, %s153
      %p155 = pneg %p35
      %p156 = pneg %p32
      %p157 = scmp.lt.s32.totalorder %s14, 1
      %s158 = scalar_select %p157, %s14, 1
      %s159 = smul.addr %s158, 8
      %s160 = scalar_lea.vmem %s1, %s159
      %p161 = pneg %p61
      %p162 = pneg %p58
      %p163 = pneg %p82
      %p164 = pneg %p79
      %p165 = pneg %p108
      %p166 = pneg %p105
      %p167 = scmp.lt.s32.totalorder %s14, 1
      %s168 = scalar_select %p167, %s14, 1
      %s169 = smul.addr %s168, 8
      %s170 = scalar_lea.vmem %s3, %s169
      %p171 = scmp.lt.s32.totalorder %s14, 1
      %s172 = scalar_select %p171, %s14, 1
      %s173 = smul.addr %s172, 8
      %s174 = scalar_lea.vmem %s0, %s173
      %p175 = scmp.lt.s32.totalorder %s14, 1
      %s176 = scalar_select %p175, %s14, 1
      %s177 = smul.addr %s176, 8
      %s178 = scalar_lea.vmem %s1, %s177
      %p179 = scmp.lt.s32.totalorder %s14, 1
      %s180 = scalar_select %p179, %s14, 1
      %s181 = smul.addr %s180, 8
      %s182 = scalar_lea.vmem %s3, %s181
      %v183 = vld [vmem:[%s174] sm:$0xff]
      %v184 = vld [vmem:[%s178] sm:$0xff]
      %v185 = vadd.f32 %v183, %v184
      %v186 = vld [vmem:[%s2] sm:$0xff]
      %v187 = vld [vmem:[%s2 + $0x8] sm:$0xff]
      %v188 = vld [vmem:[%s2 + $0x10] sm:$0xff]
      %v189 = vld [vmem:[%s2 + $0x18] sm:$0xff]
      %v190 = vld [vmem:[%s2 + $0x20] sm:$0xff]
      %v191 = vld [vmem:[%s2 + $0x28] sm:$0xff]
      %v192 = vld [vmem:[%s2 + $0x30] sm:$0xff]
      %v193 = vld [vmem:[%s2 + $0x38] sm:$0xff]
      %v194 = vld [vmem:[%s2 + $0x40] sm:$0xff]
      %v195 = vld [vmem:[%s2 + $0x48] sm:$0xff]
      %v196 = vld [vmem:[%s2 + $0x50] sm:$0xff]
      %v197 = vld [vmem:[%s2 + $0x58] sm:$0xff]
      %v198 = vld [vmem:[%s2 + $0x60] sm:$0xff]
      %v199 = vld [vmem:[%s2 + $0x68] sm:$0xff]
      %v200 = vld [vmem:[%s2 + $0x70] sm:$0xff]
      %v201 = vld [vmem:[%s2 + $0x78] sm:$0xff]
      %v202 = vld [vmem:[%s2 + $0x80] sm:$0xff]
      %v203 = vld [vmem:[%s2 + $0x88] sm:$0xff]
      %v204 = vld [vmem:[%s2 + $0x90] sm:$0xff]
      %v205 = vld [vmem:[%s2 + $0x98] sm:$0xff]
      %v206 = vld [vmem:[%s2 + $0xa0] sm:$0xff]
      %v207 = vld [vmem:[%s2 + $0xa8] sm:$0xff]
      %v208 = vld [vmem:[%s2 + $0xb0] sm:$0xff]
      %v209 = vld [vmem:[%s2 + $0xb8] sm:$0xff]
      %v210 = vld [vmem:[%s2 + $0xc0] sm:$0x1]
      %v211 = vlaneseq
      %v212 = vshrl.u32 %v211, 7
      %v213 = vsub.s32 0, %v212
      %v214 = vrot.slane %v210, %v213
      %vm215 = vcmask 261120
      %v217 = vsel %vm215, %v185, 0
      %219 = vmatprep.subr.mxu0 0.0
      %220 = vmatpush1.msra.mxu0 %v186
      %221 = vmatprep.subr.mxu0 0.0
      %222 = vmatpush1.msra.mxu0 %v187
      %223 = vmatprep.subr.mxu0 0.0
      %224 = vmatpush1.msra.mxu0 %v188
      %225 = vmatprep.subr.mxu0 0.0
      %226 = vmatpush1.msra.mxu0 %v189
      %227 = vmatprep.subr.mxu0 0.0
      %228 = vmatpush1.msra.mxu0 0.0
      %229 = vmatprep.subr.mxu0 0.0
      %230 = vmatpush1.msra.mxu0 0.0
      %231 = vmatprep.subr.mxu0 0.0
      %232 = vmatpush1.msra.mxu0 0.0
      %233 = vmatprep.subr.mxu0 0.0
      %234 = vmatpush1.msra.mxu0 0.0
      %235 = vmatprep.subr.mxu0 0.0
      %236 = vmatpush1.msra.mxu0 0.0
      %237 = vmatprep.subr.mxu0 0.0
      %238 = vmatpush1.msra.mxu0 0.0
      %239 = vmatprep.subr.mxu0 0.0
      %240 = vmatpush1.msra.mxu0 0.0
      %241 = vmatprep.subr.mxu0 0.0
      %242 = vmatpush1.msra.mxu0 0.0
      %243 = vmatprep.subr.mxu0 0.0
      %244 = vmatpush1.msra.mxu0 0.0
      %245 = vmatprep.subr.mxu0 0.0
      %246 = vmatpush1.msra.mxu0 0.0
      %247 = vmatprep.subr.mxu0 0.0
      %248 = vmatpush1.msra.mxu0 0.0
      %249 = vmatprep.subr.mxu0 0.0
      %250 = vmatpush1.msra.mxu0 0.0
      %251 = vmatprep.subr.mxu0 0.0
      %252 = vmatpush1.msra.mxu0 0.0
      %253 = vmatprep.subr.mxu0 0.0
      %254 = vmatpush1.msra.mxu0 0.0
      %255 = vmatprep.subr.mxu0 0.0
      %256 = vmatpush1.msra.mxu0 0.0
      %257 = vmatprep.subr.mxu0 0.0
      %258 = vmatpush1.msra.mxu0 0.0
      %259 = vmatprep.subr.mxu0 0.0
      %260 = vmatpush1.msra.mxu0 0.0
      %261 = vmatprep.subr.mxu0 0.0
      %262 = vmatpush1.msra.mxu0 0.0
      %263 = vmatprep.subr.mxu0 0.0
      %264 = vmatpush1.msra.mxu0 0.0
      %265 = vmatprep.subr.mxu0 0.0
      %266 = vmatpush1.msra.mxu0 0.0
      %267 = vmatprep.subr.mxu0 0.0
      %268 = vmatpush1.msra.mxu0 0.0
      %269 = vmatprep.subr.mxu0 0.0
      %270 = vmatpush1.msra.mxu0 0.0
      %271 = vmatprep.subr.mxu0 0.0
      %272 = vmatpush1.msra.mxu0 0.0
      %273 = vmatprep.subr.mxu0 0.0
      %274 = vmatpush1.msra.mxu0 0.0
      %275 = vmatprep.subr.mxu0 0.0
      %276 = vmatpush1.msra.mxu0 0.0
      %277 = vmatprep.subr.mxu0 0.0
      %278 = vmatpush1.msra.mxu0 0.0
      %279 = vmatprep.subr.mxu0 0.0
      %280 = vmatpush1.msra.mxu0 0.0
      %281 = vmatprep.subr.mxu0 0.0
      %282 = vmatpush1.msra.mxu0 0.0
      %283 = vmatprep.mubr.f32.mxu0 0.0
      %284 = vmatmul.mubr.f32.gmra.mrb[0].mxu0 %v217
      %v285 = vpop.f32.mrb[0].mxu0
      %v286 = vadd.f32 %v214, %v285
      %v287 = vpop.f32.mrb[0].mxu0
      %288 = vdwg.mxu0
      %v289 = vld [vmem:[%s2 + $0xc2] sm:$0x1]
      %v290 = vlaneseq
      %v291 = vshrl.u32 %v290, 7
      %v292 = vsub.s32 0, %v291
      %v293 = vrot.slane %v289, %v292
      %v295 = vsel %vm215, %v183, 0
      %297 = vmatprep.subr.mxu0 0.0
      %298 = vmatpush1.msra.mxu0 %v202
      %299 = vmatprep.subr.mxu0 0.0
      %300 = vmatpush1.msra.mxu0 %v203
      %301 = vmatprep.subr.mxu0 0.0
      %302 = vmatpush1.msra.mxu0 %v204
      %303 = vmatprep.subr.mxu0 0.0
      %304 = vmatpush1.msra.mxu0 %v205
      %305 = vmatprep.subr.mxu0 0.0
      %306 = vmatpush1.msra.mxu0 0.0
      %307 = vmatprep.subr.mxu0 0.0
      %308 = vmatpush1.msra.mxu0 0.0
      %309 = vmatprep.subr.mxu0 0.0
      %310 = vmatpush1.msra.mxu0 0.0
      %311 = vmatprep.subr.mxu0 0.0
      %312 = vmatpush1.msra.mxu0 0.0
      %313 = vmatprep.subr.mxu0 0.0
      %314 = vmatpush1.msra.mxu0 0.0
      %315 = vmatprep.subr.mxu0 0.0
      %316 = vmatpush1.msra.mxu0 0.0
      %317 = vmatprep.subr.mxu0 0.0
      %318 = vmatpush1.msra.mxu0 0.0
      %319 = vmatprep.subr.mxu0 0.0
      %320 = vmatpush1.msra.mxu0 0.0
      %321 = vmatprep.subr.mxu0 0.0
      %322 = vmatpush1.msra.mxu0 0.0
      %323 = vmatprep.subr.mxu0 0.0
      %324 = vmatpush1.msra.mxu0 0.0
      %325 = vmatprep.subr.mxu0 0.0
      %326 = vmatpush1.msra.mxu0 0.0
      %327 = vmatprep.subr.mxu0 0.0
      %328 = vmatpush1.msra.mxu0 0.0
      %329 = vmatprep.subr.mxu0 0.0
      %330 = vmatpush1.msra.mxu0 0.0
      %331 = vmatprep.subr.mxu0 0.0
      %332 = vmatpush1.msra.mxu0 0.0
      %333 = vmatprep.subr.mxu0 0.0
      %334 = vmatpush1.msra.mxu0 0.0
      %335 = vmatprep.subr.mxu0 0.0
      %336 = vmatpush1.msra.mxu0 0.0
      %337 = vmatprep.subr.mxu0 0.0
      %338 = vmatpush1.msra.mxu0 0.0
      %339 = vmatprep.subr.mxu0 0.0
      %340 = vmatpush1.msra.mxu0 0.0
      %341 = vmatprep.subr.mxu0 0.0
      %342 = vmatpush1.msra.mxu0 0.0
      %343 = vmatprep.subr.mxu0 0.0
      %344 = vmatpush1.msra.mxu0 0.0
      %345 = vmatprep.subr.mxu0 0.0
      %346 = vmatpush1.msra.mxu0 0.0
      %347 = vmatprep.subr.mxu0 0.0
      %348 = vmatpush1.msra.mxu0 0.0
      %349 = vmatprep.subr.mxu0 0.0
      %350 = vmatpush1.msra.mxu0 0.0
      %351 = vmatprep.subr.mxu0 0.0
      %352 = vmatpush1.msra.mxu0 0.0
      %353 = vmatprep.subr.mxu0 0.0
      %354 = vmatpush1.msra.mxu0 0.0
      %355 = vmatprep.subr.mxu0 0.0
      %356 = vmatpush1.msra.mxu0 0.0
      %357 = vmatprep.subr.mxu0 0.0
      %358 = vmatpush1.msra.mxu0 0.0
      %359 = vmatprep.subr.mxu0 0.0
      %360 = vmatpush1.msra.mxu0 0.0
      %361 = vmatprep.mubr.f32.mxu0 0.0
      %362 = vmatmul.mubr.f32.gmra.mrb[0].mxu0 %v295
      %v363 = vpop.f32.mrb[0].mxu0
      %v364 = vadd.f32 %v293, %v363
      %v365 = vpop.f32.mrb[0].mxu0
      %366 = vdwg.mxu0
      %368 = vrot.lane.b32.xlu0 %v286, 112
      %v369 = vpop.permute.xlu0 %368
      %370 = vrot.lane.b32.xlu0 %v286, 96
      %v371 = vpop.permute.xlu0 %370
      %372 = vrot.lane.b32.xlu0 %v286, 80
      %v373 = vpop.permute.xlu0 %372
      %375 = vrot.lane.b32.xlu0 %v364, 120
      %v376 = vpop.permute.xlu0 %375
      %378 = vrot.lane.b32.xlu0 %v364, 112
      %v379 = vpop.permute.xlu0 %378
      %381 = vrot.lane.b32.xlu0 %v364, 104
      %v382 = vpop.permute.xlu0 %381
      %384 = vrot.lane.b32.xlu0 %v286, 120
      %v385 = vpop.permute.xlu0 %384
      %vm386 = vcmask 64512
      %v387 = vsel %vm386, %v286, 0
      %v389 = vsel %vm386, %v385, 0
      %391 = vmatprep.subr.mxu0 0.0
      %392 = vmatpush1.xpose.msra.mxu0 %v389
      %393 = vmatprep.subr.mxu0 0.0
      %394 = vmatpush1.xpose.msra.mxu0 0.0
      %395 = vmatprep.subr.mxu0 0.0
      %396 = vmatpush1.xpose.msra.mxu0 0.0
      %397 = vmatprep.subr.mxu0 0.0
      %398 = vmatpush1.xpose.msra.mxu0 0.0
      %399 = vmatprep.subr.mxu0 0.0
      %400 = vmatpush1.xpose.msra.mxu0 0.0
      %401 = vmatprep.subr.mxu0 0.0
      %402 = vmatpush1.xpose.msra.mxu0 0.0
      %403 = vmatprep.subr.mxu0 0.0
      %404 = vmatpush1.xpose.msra.mxu0 0.0
      %405 = vmatprep.subr.mxu0 0.0
      %406 = vmatpush1.xpose.msra.mxu0 0.0
      %407 = vmatprep.subr.mxu0 0.0
      %408 = vmatpush1.xpose.msra.mxu0 0.0
      %409 = vmatprep.subr.mxu0 0.0
      %410 = vmatpush1.xpose.msra.mxu0 0.0
      %411 = vmatprep.subr.mxu0 0.0
      %412 = vmatpush1.xpose.msra.mxu0 0.0
      %413 = vmatprep.subr.mxu0 0.0
      %414 = vmatpush1.xpose.msra.mxu0 0.0
      %415 = vmatprep.subr.mxu0 0.0
      %416 = vmatpush1.xpose.msra.mxu0 0.0
      %417 = vmatprep.subr.mxu0 0.0
      %418 = vmatpush1.xpose.msra.mxu0 0.0
      %419 = vmatprep.subr.mxu0 0.0
      %420 = vmatpush1.xpose.msra.mxu0 0.0
      %421 = vmatprep.subr.mxu0 0.0
      %422 = vmatpush1.xpose.msra.mxu0 0.0
      %423 = vmatprep.subr.mxu0 0.0
      %424 = vmatpush1.xpose.msra.mxu0 0.0
      %425 = vmatprep.subr.mxu0 0.0
      %426 = vmatpush1.xpose.msra.mxu0 0.0
      %427 = vmatprep.subr.mxu0 0.0
      %428 = vmatpush1.xpose.msra.mxu0 0.0
      %429 = vmatprep.subr.mxu0 0.0
      %430 = vmatpush1.xpose.msra.mxu0 0.0
      %431 = vmatprep.subr.mxu0 0.0
      %432 = vmatpush1.xpose.msra.mxu0 0.0
      %433 = vmatprep.subr.mxu0 0.0
      %434 = vmatpush1.xpose.msra.mxu0 0.0
      %435 = vmatprep.subr.mxu0 0.0
      %436 = vmatpush1.xpose.msra.mxu0 0.0
      %437 = vmatprep.subr.mxu0 0.0
      %438 = vmatpush1.xpose.msra.mxu0 0.0
      %439 = vmatprep.subr.mxu0 0.0
      %440 = vmatpush1.xpose.msra.mxu0 0.0
      %441 = vmatprep.subr.mxu0 0.0
      %442 = vmatpush1.xpose.msra.mxu0 0.0
      %443 = vmatprep.subr.mxu0 0.0
      %444 = vmatpush1.xpose.msra.mxu0 0.0
      %445 = vmatprep.subr.mxu0 0.0
      %446 = vmatpush1.xpose.msra.mxu0 0.0
      %447 = vmatprep.subr.mxu0 0.0
      %448 = vmatpush1.xpose.msra.mxu0 0.0
      %449 = vmatprep.subr.mxu0 0.0
      %450 = vmatpush1.xpose.msra.mxu0 0.0
      %451 = vmatprep.subr.mxu0 0.0
      %452 = vmatpush1.xpose.msra.mxu0 0.0
      %453 = vmatprep.subr.mxu0 0.0
      %454 = vmatpush1.xpose.msra.mxu0 0.0
      %455 = vmatprep.mubr.f32.mxu0 0.0
      %456 = vmatmul.mubr.f32.gmra.mrb[0].mxu0 %v387
      %v457 = vpop.f32.mrb[0].mxu0
      %v458 = vadd.f32 0.0, %v457
      %v459 = vpop.f32.mrb[0].mxu0
      %460 = vdwg.mxu0
      %461 = vrot.lane.b32.xlu0 %v369, 120
      %v462 = vpop.permute.xlu0 %461
      %v463 = vsel %vm386, %v369, 0
      %v465 = vsel %vm386, %v462, 0
      %467 = vmatprep.subr.mxu0 0.0
      %468 = vmatpush1.xpose.msra.mxu0 %v465
      %469 = vmatprep.subr.mxu0 0.0
      %470 = vmatpush1.xpose.msra.mxu0 0.0
      %471 = vmatprep.subr.mxu0 0.0
      %472 = vmatpush1.xpose.msra.mxu0 0.0
      %473 = vmatprep.subr.mxu0 0.0
      %474 = vmatpush1.xpose.msra.mxu0 0.0
      %475 = vmatprep.subr.mxu0 0.0
      %476 = vmatpush1.xpose.msra.mxu0 0.0
      %477 = vmatprep.subr.mxu0 0.0
      %478 = vmatpush1.xpose.msra.mxu0 0.0
      %479 = vmatprep.subr.mxu0 0.0
      %480 = vmatpush1.xpose.msra.mxu0 0.0
      %481 = vmatprep.subr.mxu0 0.0
      %482 = vmatpush1.xpose.msra.mxu0 0.0
      %483 = vmatprep.subr.mxu0 0.0
      %484 = vmatpush1.xpose.msra.mxu0 0.0
      %485 = vmatprep.subr.mxu0 0.0
      %486 = vmatpush1.xpose.msra.mxu0 0.0
      %487 = vmatprep.subr.mxu0 0.0
      %488 = vmatpush1.xpose.msra.mxu0 0.0
      %489 = vmatprep.subr.mxu0 0.0
      %490 = vmatpush1.xpose.msra.mxu0 0.0
      %491 = vmatprep.subr.mxu0 0.0
      %492 = vmatpush1.xpose.msra.mxu0 0.0
      %493 = vmatprep.subr.mxu0 0.0
      %494 = vmatpush1.xpose.msra.mxu0 0.0
      %495 = vmatprep.subr.mxu0 0.0
      %496 = vmatpush1.xpose.msra.mxu0 0.0
      %497 = vmatprep.subr.mxu0 0.0
      %498 = vmatpush1.xpose.msra.mxu0 0.0
      %499 = vmatprep.subr.mxu0 0.0
      %500 = vmatpush1.xpose.msra.mxu0 0.0
      %501 = vmatprep.subr.mxu0 0.0
      %502 = vmatpush1.xpose.msra.mxu0 0.0
      %503 = vmatprep.subr.mxu0 0.0
      %504 = vmatpush1.xpose.msra.mxu0 0.0
      %505 = vmatprep.subr.mxu0 0.0
      %506 = vmatpush1.xpose.msra.mxu0 0.0
      %507 = vmatprep.subr.mxu0 0.0
      %508 = vmatpush1.xpose.msra.mxu0 0.0
      %509 = vmatprep.subr.mxu0 0.0
      %510 = vmatpush1.xpose.msra.mxu0 0.0
      %511 = vmatprep.subr.mxu0 0.0
      %512 = vmatpush1.xpose.msra.mxu0 0.0
      %513 = vmatprep.subr.mxu0 0.0
      %514 = vmatpush1.xpose.msra.mxu0 0.0
      %515 = vmatprep.subr.mxu0 0.0
      %516 = vmatpush1.xpose.msra.mxu0 0.0
      %517 = vmatprep.subr.mxu0 0.0
      %518 = vmatpush1.xpose.msra.mxu0 0.0
      %519 = vmatprep.subr.mxu0 0.0
      %520 = vmatpush1.xpose.msra.mxu0 0.0
      %521 = vmatprep.subr.mxu0 0.0
      %522 = vmatpush1.xpose.msra.mxu0 0.0
      %523 = vmatprep.subr.mxu0 0.0
      %524 = vmatpush1.xpose.msra.mxu0 0.0
      %525 = vmatprep.subr.mxu0 0.0
      %526 = vmatpush1.xpose.msra.mxu0 0.0
      %527 = vmatprep.subr.mxu0 0.0
      %528 = vmatpush1.xpose.msra.mxu0 0.0
      %529 = vmatprep.subr.mxu0 0.0
      %530 = vmatpush1.xpose.msra.mxu0 0.0
      %531 = vmatprep.mubr.f32.mxu0 0.0
      %532 = vmatmul.mubr.f32.gmra.mrb[0].mxu0 %v463
      %v533 = vpop.f32.mrb[0].mxu0
      %v534 = vadd.f32 0.0, %v533
      %v535 = vpop.f32.mrb[0].mxu0
      %536 = vdwg.mxu0
      %537 = vrot.lane.b32.xlu0 %v371, 120
      %v538 = vpop.permute.xlu0 %537
      %v539 = vsel %vm386, %v371, 0
      %v541 = vsel %vm386, %v538, 0
      %543 = vmatprep.subr.mxu0 0.0
      %544 = vmatpush1.xpose.msra.mxu0 %v541
      %545 = vmatprep.subr.mxu0 0.0
      %546 = vmatpush1.xpose.msra.mxu0 0.0
      %547 = vmatprep.subr.mxu0 0.0
      %548 = vmatpush1.xpose.msra.mxu0 0.0
      %549 = vmatprep.subr.mxu0 0.0
      %550 = vmatpush1.xpose.msra.mxu0 0.0
      %551 = vmatprep.subr.mxu0 0.0
      %552 = vmatpush1.xpose.msra.mxu0 0.0
      %553 = vmatprep.subr.mxu0 0.0
      %554 = vmatpush1.xpose.msra.mxu0 0.0
      %555 = vmatprep.subr.mxu0 0.0
      %556 = vmatpush1.xpose.msra.mxu0 0.0
      %557 = vmatprep.subr.mxu0 0.0
      %558 = vmatpush1.xpose.msra.mxu0 0.0
      %559 = vmatprep.subr.mxu0 0.0
      %560 = vmatpush1.xpose.msra.mxu0 0.0
      %561 = vmatprep.subr.mxu0 0.0
      %562 = vmatpush1.xpose.msra.mxu0 0.0
      %563 = vmatprep.subr.mxu0 0.0
      %564 = vmatpush1.xpose.msra.mxu0 0.0
      %565 = vmatprep.subr.mxu0 0.0
      %566 = vmatpush1.xpose.msra.mxu0 0.0
      %567 = vmatprep.subr.mxu0 0.0
      %568 = vmatpush1.xpose.msra.mxu0 0.0
      %569 = vmatprep.subr.mxu0 0.0
      %570 = vmatpush1.xpose.msra.mxu0 0.0
      %571 = vmatprep.subr.mxu0 0.0
      %572 = vmatpush1.xpose.msra.mxu0 0.0
      %573 = vmatprep.subr.mxu0 0.0
      %574 = vmatpush1.xpose.msra.mxu0 0.0
      %575 = vmatprep.subr.mxu0 0.0
      %576 = vmatpush1.xpose.msra.mxu0 0.0
      %577 = vmatprep.subr.mxu0 0.0
      %578 = vmatpush1.xpose.msra.mxu0 0.0
      %579 = vmatprep.subr.mxu0 0.0
      %580 = vmatpush1.xpose.msra.mxu0 0.0
      %581 = vmatprep.subr.mxu0 0.0
      %582 = vmatpush1.xpose.msra.mxu0 0.0
      %583 = vmatprep.subr.mxu0 0.0
      %584 = vmatpush1.xpose.msra.mxu0 0.0
      %585 = vmatprep.subr.mxu0 0.0
      %586 = vmatpush1.xpose.msra.mxu0 0.0
      %587 = vmatprep.subr.mxu0 0.0
      %588 = vmatpush1.xpose.msra.mxu0 0.0
      %589 = vmatprep.subr.mxu0 0.0
      %590 = vmatpush1.xpose.msra.mxu0 0.0
      %591 = vmatprep.subr.mxu0 0.0
      %592 = vmatpush1.xpose.msra.mxu0 0.0
      %593 = vmatprep.subr.mxu0 0.0
      %594 = vmatpush1.xpose.msra.mxu0 0.0
      %595 = vmatprep.subr.mxu0 0.0
      %596 = vmatpush1.xpose.msra.mxu0 0.0
      %597 = vmatprep.subr.mxu0 0.0
      %598 = vmatpush1.xpose.msra.mxu0 0.0
      %599 = vmatprep.subr.mxu0 0.0
      %600 = vmatpush1.xpose.msra.mxu0 0.0
      %601 = vmatprep.subr.mxu0 0.0
      %602 = vmatpush1.xpose.msra.mxu0 0.0
      %603 = vmatprep.subr.mxu0 0.0
      %604 = vmatpush1.xpose.msra.mxu0 0.0
      %605 = vmatprep.subr.mxu0 0.0
      %606 = vmatpush1.xpose.msra.mxu0 0.0
      %607 = vmatprep.mubr.f32.mxu0 0.0
      %608 = vmatmul.mubr.f32.gmra.mrb[0].mxu0 %v539
      %v609 = vpop.f32.mrb[0].mxu0
      %v610 = vadd.f32 0.0, %v609
      %v611 = vpop.f32.mrb[0].mxu0
      %612 = vdwg.mxu0
      %613 = vrot.lane.b32.xlu0 %v373, 120
      %v614 = vpop.permute.xlu0 %613
      %v615 = vsel %vm386, %v373, 0
      %v617 = vsel %vm386, %v614, 0
      %619 = vmatprep.subr.mxu0 0.0
      %620 = vmatpush1.xpose.msra.mxu0 %v617
      %621 = vmatprep.subr.mxu0 0.0
      %622 = vmatpush1.xpose.msra.mxu0 0.0
      %623 = vmatprep.subr.mxu0 0.0
      %624 = vmatpush1.xpose.msra.mxu0 0.0
      %625 = vmatprep.subr.mxu0 0.0
      %626 = vmatpush1.xpose.msra.mxu0 0.0
      %627 = vmatprep.subr.mxu0 0.0
      %628 = vmatpush1.xpose.msra.mxu0 0.0
      %629 = vmatprep.subr.mxu0 0.0
      %630 = vmatpush1.xpose.msra.mxu0 0.0
      %631 = vmatprep.subr.mxu0 0.0
      %632 = vmatpush1.xpose.msra.mxu0 0.0
      %633 = vmatprep.subr.mxu0 0.0
      %634 = vmatpush1.xpose.msra.mxu0 0.0
      %635 = vmatprep.subr.mxu0 0.0
      %636 = vmatpush1.xpose.msra.mxu0 0.0
      %637 = vmatprep.subr.mxu0 0.0
      %638 = vmatpush1.xpose.msra.mxu0 0.0
      %639 = vmatprep.subr.mxu0 0.0
      %640 = vmatpush1.xpose.msra.mxu0 0.0
      %641 = vmatprep.subr.mxu0 0.0
      %642 = vmatpush1.xpose.msra.mxu0 0.0
      %643 = vmatprep.subr.mxu0 0.0
      %644 = vmatpush1.xpose.msra.mxu0 0.0
      %645 = vmatprep.subr.mxu0 0.0
      %646 = vmatpush1.xpose.msra.mxu0 0.0
      %647 = vmatprep.subr.mxu0 0.0
      %648 = vmatpush1.xpose.msra.mxu0 0.0
      %649 = vmatprep.subr.mxu0 0.0
      %650 = vmatpush1.xpose.msra.mxu0 0.0
      %651 = vmatprep.subr.mxu0 0.0
      %652 = vmatpush1.xpose.msra.mxu0 0.0
      %653 = vmatprep.subr.mxu0 0.0
      %654 = vmatpush1.xpose.msra.mxu0 0.0
      %655 = vmatprep.subr.mxu0 0.0
      %656 = vmatpush1.xpose.msra.mxu0 0.0
      %657 = vmatprep.subr.mxu0 0.0
      %658 = vmatpush1.xpose.msra.mxu0 0.0
      %659 = vmatprep.subr.mxu0 0.0
      %660 = vmatpush1.xpose.msra.mxu0 0.0
      %661 = vmatprep.subr.mxu0 0.0
      %662 = vmatpush1.xpose.msra.mxu0 0.0
      %663 = vmatprep.subr.mxu0 0.0
      %664 = vmatpush1.xpose.msra.mxu0 0.0
      %665 = vmatprep.subr.mxu0 0.0
      %666 = vmatpush1.xpose.msra.mxu0 0.0
      %667 = vmatprep.subr.mxu0 0.0
      %668 = vmatpush1.xpose.msra.mxu0 0.0
      %669 = vmatprep.subr.mxu0 0.0
      %670 = vmatpush1.xpose.msra.mxu0 0.0
      %671 = vmatprep.subr.mxu0 0.0
      %672 = vmatpush1.xpose.msra.mxu0 0.0
      %673 = vmatprep.subr.mxu0 0.0
      %674 = vmatpush1.xpose.msra.mxu0 0.0
      %675 = vmatprep.subr.mxu0 0.0
      %676 = vmatpush1.xpose.msra.mxu0 0.0
      %677 = vmatprep.subr.mxu0 0.0
      %678 = vmatpush1.xpose.msra.mxu0 0.0
      %679 = vmatprep.subr.mxu0 0.0
      %680 = vmatpush1.xpose.msra.mxu0 0.0
      %681 = vmatprep.subr.mxu0 0.0
      %682 = vmatpush1.xpose.msra.mxu0 0.0
      %683 = vmatprep.mubr.f32.mxu0 0.0
      %684 = vmatmul.mubr.f32.gmra.mrb[0].mxu0 %v615
      %v685 = vpop.f32.mrb[0].mxu0
      %v686 = vadd.f32 0.0, %v685
      %v687 = vpop.f32.mrb[0].mxu0
      %688 = vdwg.mxu0
      %v689 = vsel %vm386, %v458, -inf
      %690 = vmax.xlane.f32.xlu0 %v689
      %v691 = vpop.xlane.xlu0 %690
      %v692 = vsel %vm386, %v534, -inf
      %693 = vmax.xlane.f32.xlu0 %v692
      %v694 = vpop.xlane.xlu0 %693
      %v695 = vsel %vm386, %v610, -inf
      %696 = vmax.xlane.f32.xlu0 %v695
      %v697 = vpop.xlane.xlu0 %696
      %v698 = vsel %vm386, %v686, -inf
      %699 = vmax.xlane.f32.xlu0 %v698
      %v700 = vpop.xlane.xlu0 %699
      %v701 = vsub.f32 %v458, %v691
      %v702 = vsub.f32 %v534, %v694
      %v703 = vsub.f32 %v610, %v697
      %v704 = vsub.f32 %v686, %v700
      %v705 = vmul.f32 %v701, 1.442695
      %v706 = vpow.pop %v705
      %v707 = vmul.f32 %v702, 1.442695
      %v708 = vpow.pop %v707
      %v709 = vmul.f32 %v703, 1.442695
      %v710 = vpow.pop %v709
      %v711 = vmul.f32 %v704, 1.442695
      %v712 = vpow.pop %v711
      %v713 = vsel %vm386, %v706, 0.0
      %714 = vadd.xlane.f32.xlu0 %v713
      %v715 = vpop.xlane.xlu0 %714
      %v716 = vsel %vm386, %v708, 0.0
      %717 = vadd.xlane.f32.xlu0 %v716
      %v718 = vpop.xlane.xlu0 %717
      %v719 = vsel %vm386, %v710, 0.0
      %720 = vadd.xlane.f32.xlu0 %v719
      %v721 = vpop.xlane.xlu0 %720
      %v722 = vsel %vm386, %v712, 0.0
      %723 = vadd.xlane.f32.xlu0 %v722
      %v724 = vpop.xlane.xlu0 %723
      %v725 = vrcp.pop %v715
      %v726 = vrcp.pop %v718
      %v727 = vrcp.pop %v721
      %v728 = vrcp.pop %v724
      %v729 = vmul.f32 %v706, %v725
      %v730 = vmul.f32 %v708, %v726
      %v731 = vmul.f32 %v710, %v727
      %v732 = vmul.f32 %v712, %v728
      %v734 = vsel %vm386, %v729, 0
      %736 = vmatprep.subr.mxu0 0.0
      %737 = vmatpush1.msra.mxu0 %v364
      %738 = vmatprep.subr.mxu0 0.0
      %739 = vmatpush1.msra.mxu0 0.0
      %740 = vmatprep.subr.mxu0 0.0
      %741 = vmatpush1.msra.mxu0 0.0
      %742 = vmatprep.subr.mxu0 0.0
      %743 = vmatpush1.msra.mxu0 0.0
      %744 = vmatprep.subr.mxu0 0.0
      %745 = vmatpush1.msra.mxu0 0.0
      %746 = vmatprep.subr.mxu0 0.0
      %747 = vmatpush1.msra.mxu0 0.0
      %748 = vmatprep.subr.mxu0 0.0
      %749 = vmatpush1.msra.mxu0 0.0
      %750 = vmatprep.subr.mxu0 0.0
      %751 = vmatpush1.msra.mxu0 0.0
      %752 = vmatprep.subr.mxu0 0.0
      %753 = vmatpush1.msra.mxu0 0.0
      %754 = vmatprep.subr.mxu0 0.0
      %755 = vmatpush1.msra.mxu0 0.0
      %756 = vmatprep.subr.mxu0 0.0
      %757 = vmatpush1.msra.mxu0 0.0
      %758 = vmatprep.subr.mxu0 0.0
      %759 = vmatpush1.msra.mxu0 0.0
      %760 = vmatprep.subr.mxu0 0.0
      %761 = vmatpush1.msra.mxu0 0.0
      %762 = vmatprep.subr.mxu0 0.0
      %763 = vmatpush1.msra.mxu0 0.0
      %764 = vmatprep.subr.mxu0 0.0
      %765 = vmatpush1.msra.mxu0 0.0
      %766 = vmatprep.subr.mxu0 0.0
      %767 = vmatpush1.msra.mxu0 0.0
      %768 = vmatprep.subr.mxu0 0.0
      %769 = vmatpush1.msra.mxu0 0.0
      %770 = vmatprep.subr.mxu0 0.0
      %771 = vmatpush1.msra.mxu0 0.0
      %772 = vmatprep.subr.mxu0 0.0
      %773 = vmatpush1.msra.mxu0 0.0
      %774 = vmatprep.subr.mxu0 0.0
      %775 = vmatpush1.msra.mxu0 0.0
      %776 = vmatprep.subr.mxu0 0.0
      %777 = vmatpush1.msra.mxu0 0.0
      %778 = vmatprep.subr.mxu0 0.0
      %779 = vmatpush1.msra.mxu0 0.0
      %780 = vmatprep.subr.mxu0 0.0
      %781 = vmatpush1.msra.mxu0 0.0
      %782 = vmatprep.subr.mxu0 0.0
      %783 = vmatpush1.msra.mxu0 0.0
      %784 = vmatprep.subr.mxu0 0.0
      %785 = vmatpush1.msra.mxu0 0.0
      %786 = vmatprep.subr.mxu0 0.0
      %787 = vmatpush1.msra.mxu0 0.0
      %788 = vmatprep.subr.mxu0 0.0
      %789 = vmatpush1.msra.mxu0 0.0
      %790 = vmatprep.subr.mxu0 0.0
      %791 = vmatpush1.msra.mxu0 0.0
      %792 = vmatprep.subr.mxu0 0.0
      %793 = vmatpush1.msra.mxu0 0.0
      %794 = vmatprep.subr.mxu0 0.0
      %795 = vmatpush1.msra.mxu0 0.0
      %796 = vmatprep.subr.mxu0 0.0
      %797 = vmatpush1.msra.mxu0 0.0
      %798 = vmatprep.subr.mxu0 0.0
      %799 = vmatpush1.msra.mxu0 0.0
      %800 = vmatprep.mubr.f32.mxu0 0.0
      %801 = vmatmul.mubr.f32.gmra.mrb[0].mxu0 %v734
      %v802 = vpop.f32.mrb[0].mxu0
      %v803 = vadd.f32 0.0, %v802
      %v804 = vpop.f32.mrb[0].mxu0
      %805 = vdwg.mxu0
      %v807 = vsel %vm386, %v730, 0
      %809 = vmatprep.subr.mxu0 0.0
      %810 = vmatpush1.msra.mxu0 %v376
      %811 = vmatprep.subr.mxu0 0.0
      %812 = vmatpush1.msra.mxu0 0.0
      %813 = vmatprep.subr.mxu0 0.0
      %814 = vmatpush1.msra.mxu0 0.0
      %815 = vmatprep.subr.mxu0 0.0
      %816 = vmatpush1.msra.mxu0 0.0
      %817 = vmatprep.subr.mxu0 0.0
      %818 = vmatpush1.msra.mxu0 0.0
      %819 = vmatprep.subr.mxu0 0.0
      %820 = vmatpush1.msra.mxu0 0.0
      %821 = vmatprep.subr.mxu0 0.0
      %822 = vmatpush1.msra.mxu0 0.0
      %823 = vmatprep.subr.mxu0 0.0
      %824 = vmatpush1.msra.mxu0 0.0
      %825 = vmatprep.subr.mxu0 0.0
      %826 = vmatpush1.msra.mxu0 0.0
      %827 = vmatprep.subr.mxu0 0.0
      %828 = vmatpush1.msra.mxu0 0.0
      %829 = vmatprep.subr.mxu0 0.0
      %830 = vmatpush1.msra.mxu0 0.0
      %831 = vmatprep.subr.mxu0 0.0
      %832 = vmatpush1.msra.mxu0 0.0
      %833 = vmatprep.subr.mxu0 0.0
      %834 = vmatpush1.msra.mxu0 0.0
      %835 = vmatprep.subr.mxu0 0.0
      %836 = vmatpush1.msra.mxu0 0.0
      %837 = vmatprep.subr.mxu0 0.0
      %838 = vmatpush1.msra.mxu0 0.0
      %839 = vmatprep.subr.mxu0 0.0
      %840 = vmatpush1.msra.mxu0 0.0
      %841 = vmatprep.subr.mxu0 0.0
      %842 = vmatpush1.msra.mxu0 0.0
      %843 = vmatprep.subr.mxu0 0.0
      %844 = vmatpush1.msra.mxu0 0.0
      %845 = vmatprep.subr.mxu0 0.0
      %846 = vmatpush1.msra.mxu0 0.0
      %847 = vmatprep.subr.mxu0 0.0
      %848 = vmatpush1.msra.mxu0 0.0
      %849 = vmatprep.subr.mxu0 0.0
      %850 = vmatpush1.msra.mxu0 0.0
      %851 = vmatprep.subr.mxu0 0.0
      %852 = vmatpush1.msra.mxu0 0.0
      %853 = vmatprep.subr.mxu0 0.0
      %854 = vmatpush1.msra.mxu0 0.0
      %855 = vmatprep.subr.mxu0 0.0
      %856 = vmatpush1.msra.mxu0 0.0
      %857 = vmatprep.subr.mxu0 0.0
      %858 = vmatpush1.msra.mxu0 0.0
      %859 = vmatprep.subr.mxu0 0.0
      %860 = vmatpush1.msra.mxu0 0.0
      %861 = vmatprep.subr.mxu0 0.0
      %862 = vmatpush1.msra.mxu0 0.0
      %863 = vmatprep.subr.mxu0 0.0
      %864 = vmatpush1.msra.mxu0 0.0
      %865 = vmatprep.subr.mxu0 0.0
      %866 = vmatpush1.msra.mxu0 0.0
      %867 = vmatprep.subr.mxu0 0.0
      %868 = vmatpush1.msra.mxu0 0.0
      %869 = vmatprep.subr.mxu0 0.0
      %870 = vmatpush1.msra.mxu0 0.0
      %871 = vmatprep.subr.mxu0 0.0
      %872 = vmatpush1.msra.mxu0 0.0
      %873 = vmatprep.mubr.f32.mxu0 0.0
      %874 = vmatmul.mubr.f32.gmra.mrb[0].mxu0 %v807
      %v875 = vpop.f32.mrb[0].mxu0
      %v876 = vadd.f32 0.0, %v875
      %v877 = vpop.f32.mrb[0].mxu0
      %878 = vdwg.mxu0
      %v880 = vsel %vm386, %v731, 0
      %882 = vmatprep.subr.mxu0 0.0
      %883 = vmatpush1.msra.mxu0 %v379
      %884 = vmatprep.subr.mxu0 0.0
      %885 = vmatpush1.msra.mxu0 0.0
      %886 = vmatprep.subr.mxu0 0.0
      %887 = vmatpush1.msra.mxu0 0.0
      %888 = vmatprep.subr.mxu0 0.0
      %889 = vmatpush1.msra.mxu0 0.0
      %890 = vmatprep.subr.mxu0 0.0
      %891 = vmatpush1.msra.mxu0 0.0
      %892 = vmatprep.subr.mxu0 0.0
      %893 = vmatpush1.msra.mxu0 0.0
      %894 = vmatprep.subr.mxu0 0.0
      %895 = vmatpush1.msra.mxu0 0.0
      %896 = vmatprep.subr.mxu0 0.0
      %897 = vmatpush1.msra.mxu0 0.0
      %898 = vmatprep.subr.mxu0 0.0
      %899 = vmatpush1.msra.mxu0 0.0
      %900 = vmatprep.subr.mxu0 0.0
      %901 = vmatpush1.msra.mxu0 0.0
      %902 = vmatprep.subr.mxu0 0.0
      %903 = vmatpush1.msra.mxu0 0.0
      %904 = vmatprep.subr.mxu0 0.0
      %905 = vmatpush1.msra.mxu0 0.0
      %906 = vmatprep.subr.mxu0 0.0
      %907 = vmatpush1.msra.mxu0 0.0
      %908 = vmatprep.subr.mxu0 0.0
      %909 = vmatpush1.msra.mxu0 0.0
      %910 = vmatprep.subr.mxu0 0.0
      %911 = vmatpush1.msra.mxu0 0.0
      %912 = vmatprep.subr.mxu0 0.0
      %913 = vmatpush1.msra.mxu0 0.0
      %914 = vmatprep.subr.mxu0 0.0
      %915 = vmatpush1.msra.mxu0 0.0
      %916 = vmatprep.subr.mxu0 0.0
      %917 = vmatpush1.msra.mxu0 0.0
      %918 = vmatprep.subr.mxu0 0.0
      %919 = vmatpush1.msra.mxu0 0.0
      %920 = vmatprep.subr.mxu0 0.0
      %921 = vmatpush1.msra.mxu0 0.0
      %922 = vmatprep.subr.mxu0 0.0
      %923 = vmatpush1.msra.mxu0 0.0
      %924 = vmatprep.subr.mxu0 0.0
      %925 = vmatpush1.msra.mxu0 0.0
      %926 = vmatprep.subr.mxu0 0.0
      %927 = vmatpush1.msra.mxu0 0.0
      %928 = vmatprep.subr.mxu0 0.0
      %929 = vmatpush1.msra.mxu0 0.0
      %930 = vmatprep.subr.mxu0 0.0
      %931 = vmatpush1.msra.mxu0 0.0
      %932 = vmatprep.subr.mxu0 0.0
      %933 = vmatpush1.msra.mxu0 0.0
      %934 = vmatprep.subr.mxu0 0.0
      %935 = vmatpush1.msra.mxu0 0.0
      %936 = vmatprep.subr.mxu0 0.0
      %937 = vmatpush1.msra.mxu0 0.0
      %938 = vmatprep.subr.mxu0 0.0
      %939 = vmatpush1.msra.mxu0 0.0
      %940 = vmatprep.subr.mxu0 0.0
      %941 = vmatpush1.msra.mxu0 0.0
      %942 = vmatprep.subr.mxu0 0.0
      %943 = vmatpush1.msra.mxu0 0.0
      %944 = vmatprep.subr.mxu0 0.0
      %945 = vmatpush1.msra.mxu0 0.0
      %946 = vmatprep.mubr.f32.mxu0 0.0
      %947 = vmatmul.mubr.f32.gmra.mrb[0].mxu0 %v880
      %v948 = vpop.f32.mrb[0].mxu0
      %v949 = vadd.f32 0.0, %v948
      %v950 = vpop.f32.mrb[0].mxu0
      %951 = vdwg.mxu0
      %v953 = vsel %vm386, %v732, 0
      %955 = vmatprep.subr.mxu0 0.0
      %956 = vmatpush1.msra.mxu0 %v382
      %957 = vmatprep.subr.mxu0 0.0
      %958 = vmatpush1.msra.mxu0 0.0
      %959 = vmatprep.subr.mxu0 0.0
      %960 = vmatpush1.msra.mxu0 0.0
      %961 = vmatprep.subr.mxu0 0.0
      %962 = vmatpush1.msra.mxu0 0.0
      %963 = vmatprep.subr.mxu0 0.0
      %964 = vmatpush1.msra.mxu0 0.0
      %965 = vmatprep.subr.mxu0 0.0
      %966 = vmatpush1.msra.mxu0 0.0
      %967 = vmatprep.subr.mxu0 0.0
      %968 = vmatpush1.msra.mxu0 0.0
      %969 = vmatprep.subr.mxu0 0.0
      %970 = vmatpush1.msra.mxu0 0.0
      %971 = vmatprep.subr.mxu0 0.0
      %972 = vmatpush1.msra.mxu0 0.0
      %973 = vmatprep.subr.mxu0 0.0
      %974 = vmatpush1.msra.mxu0 0.0
      %975 = vmatprep.subr.mxu0 0.0
      %976 = vmatpush1.msra.mxu0 0.0
      %977 = vmatprep.subr.mxu0 0.0
      %978 = vmatpush1.msra.mxu0 0.0
      %979 = vmatprep.subr.mxu0 0.0
      %980 = vmatpush1.msra.mxu0 0.0
      %981 = vmatprep.subr.mxu0 0.0
      %982 = vmatpush1.msra.mxu0 0.0
      %983 = vmatprep.subr.mxu0 0.0
      %984 = vmatpush1.msra.mxu0 0.0
      %985 = vmatprep.subr.mxu0 0.0
      %986 = vmatpush1.msra.mxu0 0.0
      %987 = vmatprep.subr.mxu0 0.0
      %988 = vmatpush1.msra.mxu0 0.0
      %989 = vmatprep.subr.mxu0 0.0
      %990 = vmatpush1.msra.mxu0 0.0
      %991 = vmatprep.subr.mxu0 0.0
      %992 = vmatpush1.msra.mxu0 0.0
      %993 = vmatprep.subr.mxu0 0.0
      %994 = vmatpush1.msra.mxu0 0.0
      %995 = vmatprep.subr.mxu0 0.0
      %996 = vmatpush1.msra.mxu0 0.0
      %997 = vmatprep.subr.mxu0 0.0
      %998 = vmatpush1.msra.mxu0 0.0
      %999 = vmatprep.subr.mxu0 0.0
      %1000 = vmatpush1.msra.mxu0 0.0
      %1001 = vmatprep.subr.mxu0 0.0
      %1002 = vmatpush1.msra.mxu0 0.0
      %1003 = vmatprep.subr.mxu0 0.0
      %1004 = vmatpush1.msra.mxu0 0.0
      %1005 = vmatprep.subr.mxu0 0.0
      %1006 = vmatpush1.msra.mxu0 0.0
      %1007 = vmatprep.subr.mxu0 0.0
      %1008 = vmatpush1.msra.mxu0 0.0
      %1009 = vmatprep.subr.mxu0 0.0
      %1010 = vmatpush1.msra.mxu0 0.0
      %1011 = vmatprep.subr.mxu0 0.0
      %1012 = vmatpush1.msra.mxu0 0.0
      %1013 = vmatprep.subr.mxu0 0.0
      %1014 = vmatpush1.msra.mxu0 0.0
      %1015 = vmatprep.subr.mxu0 0.0
      %1016 = vmatpush1.msra.mxu0 0.0
      %1017 = vmatprep.subr.mxu0 0.0
      %1018 = vmatpush1.msra.mxu0 0.0
      %1019 = vmatprep.mubr.f32.mxu0 0.0
      %1020 = vmatmul.mubr.f32.gmra.mrb[0].mxu0 %v953
      %v1021 = vpop.f32.mrb[0].mxu0
      %v1022 = vadd.f32 0.0, %v1021
      %v1023 = vpop.f32.mrb[0].mxu0
      %1024 = vdwg.mxu0
      %1026 = vrot.lane.b32.xlu0 %v876, 8
      %v1027 = vpop.permute.xlu0 %1026
      %1030 = vrot.lane.b32.xlu0 %v949, 16
      %v1031 = vpop.permute.xlu0 %1030
      %1034 = vrot.lane.b32.xlu0 %v1022, 24
      %v1035 = vpop.permute.xlu0 %1034
      %v1037 = vsel %vm386, %v803, %v1027
      %vm1038 = vcmask 130048
      %v1039 = vsel %vm1038, %v1037, %v1031
      %vm1040 = vcmask 195584
      %v1041 = vsel %vm1040, %v1039, %v1035
      %v1042 = vld [vmem:[%s2 + $0xc3] sm:$0x1]
      %v1043 = vlaneseq
      %v1044 = vshrl.u32 %v1043, 7
      %v1045 = vsub.s32 0, %v1044
      %v1046 = vrot.slane %v1042, %v1045
      %v1048 = vsel %vm215, %v1041, 0
      %1050 = vmatprep.subr.mxu0 0.0
      %1051 = vmatpush1.msra.mxu0 %v206
      %1052 = vmatprep.subr.mxu0 0.0
      %1053 = vmatpush1.msra.mxu0 %v207
      %1054 = vmatprep.subr.mxu0 0.0
      %1055 = vmatpush1.msra.mxu0 %v208
      %1056 = vmatprep.subr.mxu0 0.0
      %1057 = vmatpush1.msra.mxu0 %v209
      %1058 = vmatprep.subr.mxu0 0.0
      %1059 = vmatpush1.msra.mxu0 0.0
      %1060 = vmatprep.subr.mxu0 0.0
      %1061 = vmatpush1.msra.mxu0 0.0
      %1062 = vmatprep.subr.mxu0 0.0
      %1063 = vmatpush1.msra.mxu0 0.0
      %1064 = vmatprep.subr.mxu0 0.0
      %1065 = vmatpush1.msra.mxu0 0.0
      %1066 = vmatprep.subr.mxu0 0.0
      %1067 = vmatpush1.msra.mxu0 0.0
      %1068 = vmatprep.subr.mxu0 0.0
      %1069 = vmatpush1.msra.mxu0 0.0
      %1070 = vmatprep.subr.mxu0 0.0
      %1071 = vmatpush1.msra.mxu0 0.0
      %1072 = vmatprep.subr.mxu0 0.0
      %1073 = vmatpush1.msra.mxu0 0.0
      %1074 = vmatprep.subr.mxu0 0.0
      %1075 = vmatpush1.msra.mxu0 0.0
      %1076 = vmatprep.subr.mxu0 0.0
      %1077 = vmatpush1.msra.mxu0 0.0
      %1078 = vmatprep.subr.mxu0 0.0
      %1079 = vmatpush1.msra.mxu0 0.0
      %1080 = vmatprep.subr.mxu0 0.0
      %1081 = vmatpush1.msra.mxu0 0.0
      %1082 = vmatprep.subr.mxu0 0.0
      %1083 = vmatpush1.msra.mxu0 0.0
      %1084 = vmatprep.subr.mxu0 0.0
      %1085 = vmatpush1.msra.mxu0 0.0
      %1086 = vmatprep.subr.mxu0 0.0
      %1087 = vmatpush1.msra.mxu0 0.0
      %1088 = vmatprep.subr.mxu0 0.0
      %1089 = vmatpush1.msra.mxu0 0.0
      %1090 = vmatprep.subr.mxu0 0.0
      %1091 = vmatpush1.msra.mxu0 0.0
      %1092 = vmatprep.subr.mxu0 0.0
      %1093 = vmatpush1.msra.mxu0 0.0
      %1094 = vmatprep.subr.mxu0 0.0
      %1095 = vmatpush1.msra.mxu0 0.0
      %1096 = vmatprep.subr.mxu0 0.0
      %1097 = vmatpush1.msra.mxu0 0.0
      %1098 = vmatprep.subr.mxu0 0.0
      %1099 = vmatpush1.msra.mxu0 0.0
      %1100 = vmatprep.subr.mxu0 0.0
      %1101 = vmatpush1.msra.mxu0 0.0
      %1102 = vmatprep.subr.mxu0 0.0
      %1103 = vmatpush1.msra.mxu0 0.0
      %1104 = vmatprep.subr.mxu0 0.0
      %1105 = vmatpush1.msra.mxu0 0.0
      %1106 = vmatprep.subr.mxu0 0.0
      %1107 = vmatpush1.msra.mxu0 0.0
      %1108 = vmatprep.subr.mxu0 0.0
      %1109 = vmatpush1.msra.mxu0 0.0
      %1110 = vmatprep.subr.mxu0 0.0
      %1111 = vmatpush1.msra.mxu0 0.0
      %1112 = vmatprep.subr.mxu0 0.0
      %1113 = vmatpush1.msra.mxu0 0.0
      %1114 = vmatprep.mubr.f32.mxu0 0.0
      %1115 = vmatmul.mubr.f32.gmra.mrb[0].mxu0 %v1048
      %v1116 = vpop.f32.mrb[0].mxu0
      %v1117 = vadd.f32 %v1046, %v1116
      %v1118 = vpop.f32.mrb[0].mxu0
      %1119 = vdwg.mxu0
      %v1120 = vadd.f32 %v183, %v1117
      %v1121 = vld [vmem:[%s2 + $0xc5] sm:$0x1]
      %v1122 = vld [vmem:[%s2 + $0xc6] sm:$0x1]
      %v1123 = vsel %vm215, %v1120, 0.0
      %1124 = vadd.xlane.f32.xlu0 %v1123
      %v1125 = vpop.xlane.xlu0 %1124
      %v1126 = vrcp.pop 32.0
      %v1127 = vmul.f32 %v1125, %v1126
      %v1128 = vsub.f32 %v1120, %v1127
      %v1129 = vmul.f32 %v1128, %v1128
      %v1130 = vsel %vm215, %v1129, 0.0
      %1131 = vadd.xlane.f32.xlu0 %v1130
      %v1132 = vpop.xlane.xlu0 %1131
      %v1133 = vmul.f32 %v1132, %v1126
      %v1134 = vadd.f32 %v1133, 1e-05
      %v1135 = vrsqrt.pop %v1134
      %v1136 = vmul.f32 %v1128, %v1135
      %v1137 = vlaneseq
      %v1138 = vshrl.u32 %v1137, 7
      %v1139 = vsub.s32 0, %v1138
      %v1140 = vrot.slane %v1121, %v1139
      %v1141 = vmul.f32 %v1136, %v1140
      %v1142 = vlaneseq
      %v1143 = vshrl.u32 %v1142, 7
      %v1144 = vsub.s32 0, %v1143
      %v1145 = vrot.slane %v1122, %v1144
      %v1146 = vadd.f32 %v1141, %v1145
      %v1147 = vld [vmem:[%s2 + $0xc1] sm:$0x1]
      %v1148 = vlaneseq
      %v1149 = vshrl.u32 %v1148, 7
      %v1150 = vsub.s32 0, %v1149
      %v1151 = vrot.slane %v1147, %v1150
      %v1153 = vsel %vm215, %v1146, 0
      %1155 = vmatprep.subr.mxu0 0.0
      %1156 = vmatpush1.msra.mxu0 %v190
      %1157 = vmatprep.subr.mxu0 0.0
      %1158 = vmatpush1.msra.mxu0 %v191
      %1159 = vmatprep.subr.mxu0 0.0
      %1160 = vmatpush1.msra.mxu0 %v192
      %1161 = vmatprep.subr.mxu0 0.0
      %1162 = vmatpush1.msra.mxu0 %v193
      %1163 = vmatprep.subr.mxu0 0.0
      %1164 = vmatpush1.msra.mxu0 0.0
      %1165 = vmatprep.subr.mxu0 0.0
      %1166 = vmatpush1.msra.mxu0 0.0
      %1167 = vmatprep.subr.mxu0 0.0
      %1168 = vmatpush1.msra.mxu0 0.0
      %1169 = vmatprep.subr.mxu0 0.0
      %1170 = vmatpush1.msra.mxu0 0.0
      %1171 = vmatprep.subr.mxu0 0.0
      %1172 = vmatpush1.msra.mxu0 0.0
      %1173 = vmatprep.subr.mxu0 0.0
      %1174 = vmatpush1.msra.mxu0 0.0
      %1175 = vmatprep.subr.mxu0 0.0
      %1176 = vmatpush1.msra.mxu0 0.0
      %1177 = vmatprep.subr.mxu0 0.0
      %1178 = vmatpush1.msra.mxu0 0.0
      %1179 = vmatprep.subr.mxu0 0.0
      %1180 = vmatpush1.msra.mxu0 0.0
      %1181 = vmatprep.subr.mxu0 0.0
      %1182 = vmatpush1.msra.mxu0 0.0
      %1183 = vmatprep.subr.mxu0 0.0
      %1184 = vmatpush1.msra.mxu0 0.0
      %1185 = vmatprep.subr.mxu0 0.0
      %1186 = vmatpush1.msra.mxu0 0.0
      %1187 = vmatprep.subr.mxu0 0.0
      %1188 = vmatpush1.msra.mxu0 0.0
      %1189 = vmatprep.subr.mxu0 0.0
      %1190 = vmatpush1.msra.mxu0 0.0
      %1191 = vmatprep.subr.mxu0 0.0
      %1192 = vmatpush1.msra.mxu0 0.0
      %1193 = vmatprep.subr.mxu0 0.0
      %1194 = vmatpush1.msra.mxu0 0.0
      %1195 = vmatprep.subr.mxu0 0.0
      %1196 = vmatpush1.msra.mxu0 0.0
      %1197 = vmatprep.subr.mxu0 0.0
      %1198 = vmatpush1.msra.mxu0 0.0
      %1199 = vmatprep.subr.mxu0 0.0
      %1200 = vmatpush1.msra.mxu0 0.0
      %1201 = vmatprep.subr.mxu0 0.0
      %1202 = vmatpush1.msra.mxu0 0.0
      %1203 = vmatprep.subr.mxu0 0.0
      %1204 = vmatpush1.msra.mxu0 0.0
      %1205 = vmatprep.subr.mxu0 0.0
      %1206 = vmatpush1.msra.mxu0 0.0
      %1207 = vmatprep.subr.mxu0 0.0
      %1208 = vmatpush1.msra.mxu0 0.0
      %1209 = vmatprep.subr.mxu0 0.0
      %1210 = vmatpush1.msra.mxu0 0.0
      %1211 = vmatprep.subr.mxu0 0.0
      %1212 = vmatpush1.msra.mxu0 0.0
      %1213 = vmatprep.subr.mxu0 0.0
      %1214 = vmatpush1.msra.mxu0 0.0
      %1215 = vmatprep.subr.mxu0 0.0
      %1216 = vmatpush1.msra.mxu0 0.0
      %1217 = vmatprep.subr.mxu0 0.0
      %1218 = vmatpush1.msra.mxu0 0.0
      %1219 = vmatprep.mubr.f32.mxu0 0.0
      %1220 = vmatmul.mubr.f32.gmra.mrb[0].mxu0 %v1153
      %v1221 = vpop.f32.mrb[0].mxu0
      %v1222 = vadd.f32 %v1151, %v1221
      %v1223 = vpop.f32.mrb[0].mxu0
      %1224 = vdwg.mxu0
      %v1225 = vmax.f32 %v1222, 0.0
      %v1226 = vld [vmem:[%s2 + $0xc4] sm:$0x1]
      %v1227 = vlaneseq
      %v1228 = vshrl.u32 %v1227, 7
      %v1229 = vsub.s32 0, %v1228
      %v1230 = vrot.slane %v1226, %v1229
      %vm1231 = vcmask 523264
      %v1233 = vsel %vm1231, %v1225, 0
      %1235 = vmatprep.subr.mxu0 0.0
      %1236 = vmatpush1.msra.mxu0 %v194
      %1237 = vmatprep.subr.mxu0 0.0
      %1238 = vmatpush1.msra.mxu0 %v195
      %1239 = vmatprep.subr.mxu0 0.0
      %1240 = vmatpush1.msra.mxu0 %v196
      %1241 = vmatprep.subr.mxu0 0.0
      %1242 = vmatpush1.msra.mxu0 %v197
      %1243 = vmatprep.subr.mxu0 0.0
      %1244 = vmatpush1.msra.mxu0 %v198
      %1245 = vmatprep.subr.mxu0 0.0
      %1246 = vmatpush1.msra.mxu0 %v199
      %1247 = vmatprep.subr.mxu0 0.0
      %1248 = vmatpush1.msra.mxu0 %v200
      %1249 = vmatprep.subr.mxu0 0.0
      %1250 = vmatpush1.msra.mxu0 %v201
      %1251 = vmatprep.subr.mxu0 0.0
      %1252 = vmatpush1.msra.mxu0 0.0
      %1253 = vmatprep.subr.mxu0 0.0
      %1254 = vmatpush1.msra.mxu0 0.0
      %1255 = vmatprep.subr.mxu0 0.0
      %1256 = vmatpush1.msra.mxu0 0.0
      %1257 = vmatprep.subr.mxu0 0.0
      %1258 = vmatpush1.msra.mxu0 0.0
      %1259 = vmatprep.subr.mxu0 0.0
      %1260 = vmatpush1.msra.mxu0 0.0
      %1261 = vmatprep.subr.mxu0 0.0
      %1262 = vmatpush1.msra.mxu0 0.0
      %1263 = vmatprep.subr.mxu0 0.0
      %1264 = vmatpush1.msra.mxu0 0.0
      %1265 = vmatprep.subr.mxu0 0.0
      %1266 = vmatpush1.msra.mxu0 0.0
      %1267 = vmatprep.subr.mxu0 0.0
      %1268 = vmatpush1.msra.mxu0 0.0
      %1269 = vmatprep.subr.mxu0 0.0
      %1270 = vmatpush1.msra.mxu0 0.0
      %1271 = vmatprep.subr.mxu0 0.0
      %1272 = vmatpush1.msra.mxu0 0.0
      %1273 = vmatprep.subr.mxu0 0.0
      %1274 = vmatpush1.msra.mxu0 0.0
      %1275 = vmatprep.subr.mxu0 0.0
      %1276 = vmatpush1.msra.mxu0 0.0
      %1277 = vmatprep.subr.mxu0 0.0
      %1278 = vmatpush1.msra.mxu0 0.0
      %1279 = vmatprep.subr.mxu0 0.0
      %1280 = vmatpush1.msra.mxu0 0.0
      %1281 = vmatprep.subr.mxu0 0.0
      %1282 = vmatpush1.msra.mxu0 0.0
      %1283 = vmatprep.subr.mxu0 0.0
      %1284 = vmatpush1.msra.mxu0 0.0
      %1285 = vmatprep.subr.mxu0 0.0
      %1286 = vmatpush1.msra.mxu0 0.0
      %1287 = vmatprep.subr.mxu0 0.0
      %1288 = vmatpush1.msra.mxu0 0.0
      %1289 = vmatprep.subr.mxu0 0.0
      %1290 = vmatpush1.msra.mxu0 0.0
      %1291 = vmatprep.subr.mxu0 0.0
      %1292 = vmatpush1.msra.mxu0 0.0
      %1293 = vmatprep.subr.mxu0 0.0
      %1294 = vmatpush1.msra.mxu0 0.0
      %1295 = vmatprep.subr.mxu0 0.0
      %1296 = vmatpush1.msra.mxu0 0.0
      %1297 = vmatprep.subr.mxu0 0.0
      %1298 = vmatpush1.msra.mxu0 0.0
      %1299 = vmatprep.mubr.f32.mxu0 0.0
      %1300 = vmatmul.mubr.f32.gmra.mrb[0].mxu0 %v1233
      %v1301 = vpop.f32.mrb[0].mxu0
      %v1302 = vadd.f32 %v1230, %v1301
      %v1303 = vpop.f32.mrb[0].mxu0
      %1304 = vdwg.mxu0
      %v1305 = vadd.f32 %v1146, %v1302
      %v1306 = vld [vmem:[%s2 + $0xc7] sm:$0x1]
      %v1307 = vld [vmem:[%s2 + $0xc8] sm:$0x1]
      %v1308 = vsel %vm215, %v1305, 0.0
      %1309 = vadd.xlane.f32.xlu0 %v1308
      %v1310 = vpop.xlane.xlu0 %1309
      %v1311 = vmul.f32 %v1310, %v1126
      %v1312 = vsub.f32 %v1305, %v1311
      %v1313 = vmul.f32 %v1312, %v1312
      %v1314 = vsel %vm215, %v1313, 0.0
      %1315 = vadd.xlane.f32.xlu0 %v1314
      %v1316 = vpop.xlane.xlu0 %1315
      %v1317 = vmul.f32 %v1316, %v1126
      %v1318 = vadd.f32 %v1317, 1e-05
      %v1319 = vrsqrt.pop %v1318
      %v1320 = vmul.f32 %v1312, %v1319
      %v1321 = vlaneseq
      %v1322 = vshrl.u32 %v1321, 7
      %v1323 = vsub.s32 0, %v1322
      %v1324 = vrot.slane %v1306, %v1323
      %v1325 = vmul.f32 %v1320, %v1324
      %v1326 = vlaneseq
      %v1327 = vshrl.u32 %v1326, 7
      %v1328 = vsub.s32 0, %v1327
      %v1329 = vrot.slane %v1307, %v1328
      %v1330 = vadd.f32 %v1325, %v1329
      %1331 = vst.msk [vmem:[%s182] sm:$0xff] %vm215, %v1330
      %p1332 = scmp.lt.s32.totalorder %s14, 1
      %s1333 = scalar_select %p1332, %s14, 1
      %s1334 = smul.addr %s1333, 8
      %s1335 = scalar_lea.vmem %s3, %s1334
      // Predicated region
      $region33: #{transformer_encoder_layer.1} parent=31 // pred_check
        %p1336 = pneg %p105
      $region34: #{transformer_encoder_layer.1} parent=31 // pred_check_branch
        %1338 = sbr.rel (%p1336) target = $region36
      $region35: #{transformer_encoder_layer.1} parent=31 // pred_region
        _
      $region36: #{transformer_encoder_layer.1} parent=31 // pred_fallthru
        _
    $region32: #{transformer_encoder_layer.1} parent=5 // pred_fallthru
      _
    %p1339 = scmp.le.s32.totalorder 2, %s9
    // Predicated region
    $region37: #{transformer_encoder_layer.1} parent=5 // pred_check
      %p1340 = pneg %p1339
    $region38: #{transformer_encoder_layer.1} parent=5 // pred_check_branch
      %1342 = sbr.rel (%p1340) target = $region40
    $region39: #{transformer_encoder_layer.1} parent=5 // pred_region
      %s1343 = ssub.s32 %s9, 2
      // Predicated region
      $region41: #{transformer_encoder_layer.1} parent=39 // pred_check
        %p1344 = pneg %p111
      $region42: #{transformer_encoder_layer.1} parent=39 // pred_check_branch
        %1346 = sbr.rel (%p1344) target = $region44
      $region43: #{transformer_encoder_layer.1} parent=39 // pred_region
        %p1347 = scmp.lt.s32.totalorder %s15, 1
        %s1348 = scalar_select %p1347, %s15, 1
        %s1349 = smul.addr %s1348, 8
        %s1350 = scalar_lea.vmem %s3, %s1349
      $region44: #{transformer_encoder_layer.1} parent=39 // pred_fallthru
        _
    $region40: #{transformer_encoder_layer.1} parent=5 // pred_fallthru
      _
  $region6: #{transformer_encoder_layer.1} parent=0 // loop_footer
    %s13 = sadd.s32 1, %s9
  $region7: #{transformer_encoder_layer.1} parent=0 // loop_footer_branch
    %8 = sbr.rel target = $region3
  $region8: #{transformer_encoder_layer.1} parent=0 // loop_exit
    _

</llo_original>
